<compile_context>
chip_gen: v7x
topology: tpu7x:2x2x1
jax: 0.10.0
libtpu: 0.0.40
codegen_flags: <defaults>
</compile_context>

<pallas_src>
import functools

import jax
import jax.numpy as jnp
from jax.experimental import pallas as pl
from jax.experimental.pallas import tpu as pltpu

LANE = 128


def _round_up(x, m):
    return (x + m - 1) // m * m


def _elu(x):
    # ELU(alpha=1): x if x > 0 else exp(x) - 1  (clamp the exp arg on the untaken branch).
    # TODO(synk): expm1 on the negative branch would be marginally more accurate.
    return jnp.where(x > 0, x, jnp.exp(jnp.minimum(x, 0.0)) - 1.0)


def _vmem_capacity_bytes():
    # Per-TensorCore VMEM capacity (v5e/v6e: 128 MiB, v7x: 64 MiB); conservative fallback.
    try:
        info = pltpu.get_tpu_info()
        cap = int(getattr(info, "vmem_capacity_bytes", 0) or 0)
        if cap > 0:
            return cap
    except Exception:
        pass
    return 64 * 1024 * 1024


def _compute_target_kernel(feat_ref, rew_ref, disc_ref,
                           w1t_ref, b1_ref, w2t_ref, b2_ref, w3_ref, b3_ref,
                           target_ref, weights_ref, value_ref,
                           *, T, lam, matmul_dtype):
    """One batch tile, everything batch-on-lanes.

      feat_ref   [T, D, TB]  matmul_dtype      rew/disc_ref [T, TB]  f32
      w1t_ref    [Hp, D]     w2t_ref [Hp, Hp]  (transposed weights, matmul_dtype)
      b1/b2/w3   [Hp, 1] f32                   b3_ref SMEM (1,1) f32
      target_ref [T-1, TB]   weights_ref [T, TB]   f32 outputs
      value_ref  [T, 1, TB]  f32 VMEM scratch (per-time value rows)
    """

    def value_at(t):
        # Transposed MLP: v_t^T = w3^T . elu(w2^T . elu(w1^T x_t^T + b1) + b2) + b3,
        # so the value for time t comes out directly as a [1, TB] batch-on-lanes row
        # (no sublane<->lane relayout, no [N,1] intermediates).
        x_t = feat_ref[t]                                                  # [D, TB]
        h = jnp.dot(w1t_ref[...], x_t,
                    preferred_element_type=jnp.float32) + b1_ref[...]      # [Hp, TB] f32
        h = _elu(h).astype(matmul_dtype)                                   # bf16 right after ELU
        h = jnp.dot(w2t_ref[...], h,
                    preferred_element_type=jnp.float32) + b2_ref[...]      # [Hp, TB] f32
        h = _elu(h)
        # Head (Hp -> 1): VPU multiply + sublane reduce; keeps the MXU slot free.
        return jnp.sum(h * w3_ref[...], axis=0, keepdims=True) + b3_ref[0, 0]   # [1, TB]

    # ---- slow_value MLP, chunked over time (caps live activations at ~Hp*TB) ----
    # value[0] never enters the target/weights math, so start at t = 1.
    @pl.loop(1, T)
    def _(t):
        value_ref[t] = value_at(t)

    # ---- lambda_return(reward[1:], value[:-1], discount[1:], value[-1], lam) ----
    # acc_t = r_{t+1} + d_{t+1} * v_{t+1} * (1 - lam) + d_{t+1} * lam * acc_{t+1}
    # Rows are read from the refs inside the loop (only `acc` is carried) and written
    # straight into the VMEM output block; HBM writeback is coalesced by the pipeline.
    acc = value_ref[T - 1]                                                 # bootstrap, [1, TB]
    for t in range(T - 2, -1, -1):                                         # static backward loop
        d_t = disc_ref[pl.ds(t + 1, 1), :]
        base = rew_ref[pl.ds(t + 1, 1), :] + d_t * value_ref[t + 1] * (1.0 - lam)
        acc = base + d_t * lam * acc
        target_ref[pl.ds(t, 1), :] = acc

    # ---- weights = cumprod(cat([ones, discount[:-1]]), axis=time) ----
    cum = jnp.full((1, disc_ref.shape[1]), 1.0, jnp.float32)
    weights_ref[pl.ds(0, 1), :] = cum
    for t in range(1, T):
        cum = cum * disc_ref[pl.ds(t - 1, 1), :]
        weights_ref[pl.ds(t, 1), :] = cum


def transdreamer_compute_target(imag_feat, reward, discount, params, lambda_=0.95,
                                *, block_b=1024, matmul_dtype=jnp.bfloat16):
    """Pallas equivalent of TransDreamer.compute_target.

    imag_feat: [B, T, D] f32; reward / discount: [B, T, 1] f32
    params:    (w1 [D,H], b1 [H], w2 [H,H], b2 [H], w3 [H,1], b3 [1]) of the slow_value MLP
    returns:   target [B, T-1, 1] f32, weights [B, T, 1] f32

    matmul_dtype=jnp.bfloat16 (default) feeds the MXU in bf16 with f32 accumulation;
    pass jnp.float32 for exact parity with the f32 PyTorch module.
    """
    B, T, D = imag_feat.shape
    assert T >= 2
    w1, b1, w2, b2, w3, b3 = params
    H = w1.shape[1]

    # Pad hidden width to a lane multiple so the MXU M/N dims are full (zero padding exact).
    Hp = _round_up(H, LANE)
    if Hp != H:
        w1 = jnp.pad(w1, ((0, 0), (0, Hp - H)))
        b1 = jnp.pad(b1, ((0, Hp - H),))
        w2 = jnp.pad(w2, ((0, Hp - H), (0, Hp - H)))
        b2 = jnp.pad(b2, ((0, Hp - H),))
        w3 = jnp.pad(w3, ((0, Hp - H), (0, 0)))

    isz = jnp.dtype(matmul_dtype).itemsize

    def est_vmem(tb):
        feat_stream = 2 * T * D * tb * isz                   # double-buffered feat tile
        ts_stream = 2 * 2 * T * tb * 4                       # reward + discount
        out_stream = 2 * (2 * T - 1) * tb * 4                # target + weights
        params_res = 2 * ((D + Hp) * Hp * isz + 3 * Hp * 4)  # resident MLP params
        value_scr = T * 8 * tb * 4                           # (T,1,TB) rows, 8-sublane padded
        act = tb * (Hp * (isz + 4) + D * isz)                # per-time-chunk activations
        return feat_stream + ts_stream + out_stream + params_res + value_scr + act

    # Generation-aware VMEM budget: ~50 MiB on v7x (64 MiB/TC), ~100 MiB on v5e/v6e (128 MiB).
    cap = _vmem_capacity_bytes()
    budget = min(int(cap * 0.78), cap - (12 << 20))

    # Batch tile: as large as the budget allows (amortizes per-grid-step overhead, MiB-scale
    # feat DMAs), lane-multiple; keep >= 2 grid steps when possible so both v7x TCs get work.
    Bp_min = _round_up(B, LANE)
    TB = min(_round_up(max(block_b, LANE), LANE), Bp_min)
    while TB > LANE and est_vmem(TB) > budget:
        TB -= LANE
    if TB >= Bp_min and Bp_min > LANE:
        TB = _round_up(Bp_min // 2, LANE)
    Bp = _round_up(B, TB)

    if Bp != B:
        pad = Bp - B
        imag_feat = jnp.pad(imag_feat, ((0, pad), (0, 0), (0, 0)))
        reward = jnp.pad(reward, ((0, pad), (0, 0), (0, 0)))
        discount = jnp.pad(discount, ((0, pad), (0, 0), (0, 0)))

    # Time/feature-major, batch-on-lanes layouts.  The transpose and the matmul-dtype cast
    # fuse into a single XLA pass under jit (no standalone HBM cast pass), and the kernel
    # never needs a sublane<->lane relayout.
    feat_tdb = jnp.transpose(imag_feat, (1, 2, 0)).astype(matmul_dtype)     # [T, D, Bp]
    rew_tb = jnp.transpose(reward[..., 0], (1, 0)).astype(jnp.float32)      # [T, Bp]
    disc_tb = jnp.transpose(discount[..., 0], (1, 0)).astype(jnp.float32)   # [T, Bp]
    w1t = jnp.transpose(w1, (1, 0)).astype(matmul_dtype)                    # [Hp, D]
    w2t = jnp.transpose(w2, (1, 0)).astype(matmul_dtype)                    # [Hp, Hp]
    b1c = b1.reshape(Hp, 1).astype(jnp.float32)
    b2c = b2.reshape(Hp, 1).astype(jnp.float32)
    w3c = w3.reshape(Hp, 1).astype(jnp.float32)
    b3s = b3.reshape(1, 1).astype(jnp.float32)

    grid = (Bp // TB,)
    kernel = functools.partial(_compute_target_kernel, T=T, lam=float(lambda_),
                               matmul_dtype=matmul_dtype)

    const = lambda b: (0, 0)    # resident params: same block every step
    in_specs = [
        pl.BlockSpec((T, D, TB), lambda b: (0, 0, b)),        # imag_feat, streamed per tile
        pl.BlockSpec((T, TB), lambda b: (0, b)),              # reward   [T, Bp]
        pl.BlockSpec((T, TB), lambda b: (0, b)),              # discount [T, Bp]
        pl.BlockSpec((Hp, D), const),                         # w1^T (resident)
        pl.BlockSpec((Hp, 1), const),                         # b1
        pl.BlockSpec((Hp, Hp), const),                        # w2^T (resident)
        pl.BlockSpec((Hp, 1), const),                         # b2
        pl.BlockSpec((Hp, 1), const),                         # w3 column (VPU head)
        pl.BlockSpec(memory_space=pltpu.MemorySpace.SMEM),    # b3 scalar
    ]
    out_specs = (
        pl.BlockSpec((T - 1, TB), lambda b: (0, b)),          # target  [T-1, Bp]
        pl.BlockSpec((T, TB), lambda b: (0, b)),              # weights [T, Bp]
    )

    vmem_limit = int(min(max(est_vmem(TB) + (8 << 20), 32 << 20), budget))

    target_tb, weights_tb = pl.pallas_call(
        kernel,
        out_shape=(jax.ShapeDtypeStruct((T - 1, Bp), jnp.float32),
                   jax.ShapeDtypeStruct((T, Bp), jnp.float32)),
        grid=grid,
        in_specs=in_specs,
        out_specs=out_specs,
        scratch_shapes=[pltpu.VMEM((T, 1, TB), jnp.float32)],  # per-time value rows
        compiler_params=pltpu.CompilerParams(
            dimension_semantics=("parallel",),                 # split batch tiles over TCs
            vmem_limit_bytes=vmem_limit),
    )(feat_tdb, rew_tb, disc_tb, w1t, b1c, w2t, b2c, w3c, b3s)

    # Back to the PyTorch [B, T, 1] convention (drop batch padding).
    target = jnp.transpose(target_tb[:, :B], (1, 0))[..., None]      # [B, T-1, 1]
    weights = jnp.transpose(weights_tb[:, :B], (1, 0))[..., None]    # [B, T, 1]
    return target, weights


def _reference_compute_target(imag_feat, reward, discount, params, lambda_=0.95,
                              matmul_dtype=jnp.bfloat16):
    """Pure-JAX reference mirroring the PyTorch math (and the kernel's matmul input dtype)."""
    w1, b1, w2, b2, w3, b3 = params
    f = imag_feat.astype(matmul_dtype).astype(jnp.float32)
    w1f = w1.astype(matmul_dtype).astype(jnp.float32)
    w2f = w2.astype(matmul_dtype).astype(jnp.float32)
    h = _elu(f @ w1f + b1)
    h = h.astype(matmul_dtype).astype(jnp.float32)
    h = _elu(h @ w2f + b2)
    value = jnp.sum(h * w3[:, 0], axis=-1) + b3[0]                   # [B, T]
    rew = reward[..., 0]
    disc = discount[..., 0]
    T = value.shape[1]
    bootstrap = value[:, -1]
    r = rew[:, 1:]
    d = disc[:, 1:]
    nv = jnp.concatenate([value[:, 1:-1], bootstrap[:, None]], axis=1)
    tgt = r + d * nv * (1.0 - lambda_)
    acc = bootstrap
    outs = []
    for t in range(T - 2, -1, -1):
        acc = tgt[:, t] + d[:, t] * lambda_ * acc
        outs.append(acc)
    target = jnp.stack(outs[::-1], axis=1)
    dshift = jnp.concatenate([jnp.ones_like(disc[:, :1]), disc[:, :-1]], axis=1)
    weights = jnp.cumprod(dshift, axis=1)
    return target[..., None], weights[..., None]


# TODO(synk): world_model.imagine_ahead, actor/value torch.distributions heads, policy(),
# slow-target state_dict copy and wandb logging have no clean standalone Pallas equivalent
# without the submodule definitions; only the compute_target / lambda_return hot path is
# kernelized here.


if __name__ == "__main__":
    key = jax.random.PRNGKey(0)
    # Small, but grid-exercising: B=200 -> two 128-lane batch tiles (second one part padding).
    B, T, D, H = 200, 8, 32, 32
    lambda_ = 0.95

    k_feat, k_rew, k_disc, k1, kb1, k2, kb2, k3, kb3 = jax.random.split(key, 9)

    imag_feat = jax.random.normal(k_feat, (B, T, D), jnp.float32)
    reward = jax.random.normal(k_rew, (B, T, 1), jnp.float32) * 0.1
    discount = jax.nn.sigmoid(jax.random.normal(k_disc, (B, T, 1), jnp.float32)) * 0.99

    # Deterministic slow_value DenseDecoder params: D -> H -> H -> 1
    w1 = jax.random.normal(k1, (D, H), jnp.float32) * (1.0 / jnp.sqrt(D))
    b1 = jax.random.normal(kb1, (H,), jnp.float32) * 0.1
    w2 = jax.random.normal(k2, (H, H), jnp.float32) * (1.0 / jnp.sqrt(H))
    b2 = jax.random.normal(kb2, (H,), jnp.float32) * 0.1
    w3 = jax.random.normal(k3, (H, 1), jnp.float32) * (1.0 / jnp.sqrt(H))
    b3 = jax.random.normal(kb3, (1,), jnp.float32) * 0.1
    params = (w1, b1, w2, b2, w3, b3)

    # jit the wrapper so the wrapper-side transpose and the bf16 cast fuse into one pass.
    fn = jax.jit(functools.partial(transdreamer_compute_target, lambda_=lambda_))
    target, weights = fn(imag_feat, reward, discount, params)
    jax.block_until_ready((target, weights))

    ref_target, ref_weights = _reference_compute_target(imag_feat, reward, discount,
                                                        params, lambda_)
    assert target.shape == (B, T - 1, 1) and weights.shape == (B, T, 1)
    assert jnp.allclose(target, ref_target, rtol=1e-3, atol=1e-4), \
        float(jnp.max(jnp.abs(target - ref_target)))
    assert jnp.allclose(weights, ref_weights, rtol=1e-3, atol=1e-4)

    print("KERNEL_OK")
</pallas_src>

<mosaic_0001>
module attributes {stable_mosaic.version = 11 : i64} {
  func.func @_compute_target_kernel(%arg0: i32, %arg1: memref<8x32x128xbf16, #tpu.memory_space<vmem>>, %arg2: memref<8x128xf32, #tpu.memory_space<vmem>>, %arg3: memref<8x128xf32, #tpu.memory_space<vmem>>, %arg4: memref<128x32xbf16, #tpu.memory_space<vmem>>, %arg5: memref<128x1xf32, #tpu.memory_space<vmem>>, %arg6: memref<128x128xbf16, #tpu.memory_space<vmem>>, %arg7: memref<128x1xf32, #tpu.memory_space<vmem>>, %arg8: memref<128x1xf32, #tpu.memory_space<vmem>>, %arg9: memref<1x1xf32, #tpu.memory_space<smem>>, %arg10: memref<7x128xf32, #tpu.memory_space<vmem>>, %arg11: memref<8x128xf32, #tpu.memory_space<vmem>>, %arg12: memref<8x1x128xf32, #tpu.memory_space<vmem>>) attributes {dimension_semantics = [#tpu.dimension_semantics<parallel>], iteration_bounds = array<i64: 2>, scalar_prefetch = 0 : i64, scratch_operands = 1 : i64, tpu.core_type = #tpu.core_type<tc>, window_params = [{transform_indices = @transform_0, window_bounds = array<i64: 8, 32, 128>}, {transform_indices = @transform_1, window_bounds = array<i64: 8, 128>}, {transform_indices = @transform_2, window_bounds = array<i64: 8, 128>}, {pipeline_mode = #tpu.pipeline_mode<synchronous>, transform_indices = @transform_3, window_bounds = array<i64: 128, 32>}, {pipeline_mode = #tpu.pipeline_mode<synchronous>, transform_indices = @transform_4, window_bounds = array<i64: 128, 1>}, {pipeline_mode = #tpu.pipeline_mode<synchronous>, transform_indices = @transform_5, window_bounds = array<i64: 128, 128>}, {pipeline_mode = #tpu.pipeline_mode<synchronous>, transform_indices = @transform_6, window_bounds = array<i64: 128, 1>}, {pipeline_mode = #tpu.pipeline_mode<synchronous>, transform_indices = @transform_7, window_bounds = array<i64: 128, 1>}, {transform_indices = @transform_8, window_bounds = array<i64: 1, 1>}, {transform_indices = @transform_9, window_bounds = array<i64: 7, 128>}, {transform_indices = @transform_10, window_bounds = array<i64: 8, 128>}]} {
    %c0_i32 = arith.constant 0 : i32
    %c7_i32 = arith.constant 7 : i32
    %0 = arith.addi %c0_i32, %c7_i32 : i32
    %c1_i32 = arith.constant 1 : i32
    scf.for %arg13 = %c0_i32 to %0 step %c1_i32  : i32 {
      %c1_i32_103 = arith.constant 1 : i32
      %117 = arith.muli %arg13, %c1_i32_103 : i32
      %c1_i32_104 = arith.constant 1 : i32
      %118 = arith.addi %c1_i32_104, %117 : i32
      %119 = arith.index_cast %118 : i32 to index
      %c0_105 = arith.constant 0 : index
      %c0_106 = arith.constant 0 : index
      %120 = vector.load %arg1[%119, %c0_105, %c0_106] : memref<8x32x128xbf16, #tpu.memory_space<vmem>>, vector<1x32x128xbf16>
      %121 = vector.shape_cast %120 : vector<1x32x128xbf16> to vector<32x128xbf16>
      %c0_107 = arith.constant 0 : index
      %c0_108 = arith.constant 0 : index
      %122 = vector.load %arg4[%c0_107, %c0_108] : memref<128x32xbf16, #tpu.memory_space<vmem>>, vector<128x32xbf16>
      %cst_109 = arith.constant dense<0.000000e+00> : vector<128x128xf32>
      %123 = tpu.matmul %122, %121, %cst_109 {dimension_numbers = #tpu.dot_dimension_numbers<[1], [0], [0], [1], [0, 0, 1, 1], [], []>} : vector<128x32xbf16>, vector<32x128xbf16>, vector<128x128xf32> -> vector<128x128xf32>
      %c0_110 = arith.constant 0 : index
      %c0_111 = arith.constant 0 : index
      %124 = vector.load %arg5[%c0_110, %c0_111] : memref<128x1xf32, #tpu.memory_space<vmem>>, vector<128x1xf32>
      %125 = vector.broadcast %124 : vector<128x1xf32> to vector<128x128xf32>
      %126 = arith.addf %123, %125 : vector<128x128xf32>
      %cst_112 = arith.constant 0.000000e+00 : f32
      %127 = vector.broadcast %cst_112 : f32 to vector<128x128xf32>
      %128 = arith.cmpf ogt, %126, %127 : vector<128x128xf32>
      %cst_113 = arith.constant 0.000000e+00 : f32
      %129 = vector.broadcast %cst_113 : f32 to vector<128x128xf32>
      %130 = arith.minimumf %126, %129 : vector<128x128xf32>
      %131 = math.exp %130 : vector<128x128xf32>
      %cst_114 = arith.constant 1.000000e+00 : f32
      %132 = vector.broadcast %cst_114 : f32 to vector<128x128xf32>
      %133 = arith.subf %131, %132 : vector<128x128xf32>
      %134 = arith.select %128, %126, %133 : vector<128x128xi1>, vector<128x128xf32>
      %135 = arith.truncf %134 : vector<128x128xf32> to vector<128x128xbf16>
      %c0_115 = arith.constant 0 : index
      %c0_116 = arith.constant 0 : index
      %136 = vector.load %arg6[%c0_115, %c0_116] : memref<128x128xbf16, #tpu.memory_space<vmem>>, vector<128x128xbf16>
      %cst_117 = arith.constant dense<0.000000e+00> : vector<128x128xf32>
      %137 = tpu.matmul %136, %135, %cst_117 {dimension_numbers = #tpu.dot_dimension_numbers<[1], [0], [0], [1], [0, 0, 1, 1], [], []>} : vector<128x128xbf16>, vector<128x128xbf16>, vector<128x128xf32> -> vector<128x128xf32>
      %c0_118 = arith.constant 0 : index
      %c0_119 = arith.constant 0 : index
      %138 = vector.load %arg7[%c0_118, %c0_119] : memref<128x1xf32, #tpu.memory_space<vmem>>, vector<128x1xf32>
      %139 = vector.broadcast %138 : vector<128x1xf32> to vector<128x128xf32>
      %140 = arith.addf %137, %139 : vector<128x128xf32>
      %cst_120 = arith.constant 0.000000e+00 : f32
      %141 = vector.broadcast %cst_120 : f32 to vector<128x128xf32>
      %142 = arith.cmpf ogt, %140, %141 : vector<128x128xf32>
      %cst_121 = arith.constant 0.000000e+00 : f32
      %143 = vector.broadcast %cst_121 : f32 to vector<128x128xf32>
      %144 = arith.minimumf %140, %143 : vector<128x128xf32>
      %145 = math.exp %144 : vector<128x128xf32>
      %cst_122 = arith.constant 1.000000e+00 : f32
      %146 = vector.broadcast %cst_122 : f32 to vector<128x128xf32>
      %147 = arith.subf %145, %146 : vector<128x128xf32>
      %148 = arith.select %142, %140, %147 : vector<128x128xi1>, vector<128x128xf32>
      %c0_123 = arith.constant 0 : index
      %c0_124 = arith.constant 0 : index
      %149 = vector.load %arg8[%c0_123, %c0_124] : memref<128x1xf32, #tpu.memory_space<vmem>>, vector<128x1xf32>
      %150 = vector.broadcast %149 : vector<128x1xf32> to vector<128x128xf32>
      %151 = arith.mulf %148, %150 : vector<128x128xf32>
      %cst_125 = arith.constant dense<0.000000e+00> : vector<128xf32>
      %152 = vector.multi_reduction <add>, %151, %cst_125 [0] : vector<128x128xf32> to vector<128xf32>
      %153 = vector.shape_cast %152 : vector<128xf32> to vector<1x128xf32>
      %c0_126 = arith.constant 0 : index
      %c0_127 = arith.constant 0 : index
      %154 = memref.load %arg9[%c0_126, %c0_127] : memref<1x1xf32, #tpu.memory_space<smem>>
      %155 = vector.broadcast %154 : f32 to vector<1x128xf32>
      %156 = arith.addf %153, %155 : vector<1x128xf32>
      %157 = arith.index_cast %118 : i32 to index
      %c0_128 = arith.constant 0 : index
      %c0_129 = arith.constant 0 : index
      %158 = vector.load %arg12[%157, %c0_128, %c0_129] : memref<8x1x128xf32, #tpu.memory_space<vmem>>, vector<1x1x128xf32>
      %159 = vector.shape_cast %158 : vector<1x1x128xf32> to vector<1x128xf32>
      %160 = vector.shape_cast %156 : vector<1x128xf32> to vector<1x1x128xf32>
      tpu.vector_store %arg12[%157, %c0_128, %c0_129], %160 {strides = array<i32>} : memref<8x1x128xf32, #tpu.memory_space<vmem>>, vector<1x1x128xf32>,
    }
    %c7_i32_0 = arith.constant 7 : i32
    %c7 = arith.constant 7 : index
    %c0 = arith.constant 0 : index
    %c0_1 = arith.constant 0 : index
    %1 = vector.load %arg12[%c7, %c0, %c0_1] : memref<8x1x128xf32, #tpu.memory_space<vmem>>, vector<1x1x128xf32>
    %2 = vector.shape_cast %1 : vector<1x1x128xf32> to vector<1x128xf32>
    %c7_2 = arith.constant 7 : index
    %c0_3 = arith.constant 0 : index
    %3 = vector.load %arg3[%c7_2, %c0_3] : memref<8x128xf32, #tpu.memory_space<vmem>>, vector<1x128xf32>
    %c7_4 = arith.constant 7 : index
    %c0_5 = arith.constant 0 : index
    %4 = vector.load %arg2[%c7_4, %c0_5] : memref<8x128xf32, #tpu.memory_space<vmem>>, vector<1x128xf32>
    %c7_6 = arith.constant 7 : index
    %c0_7 = arith.constant 0 : index
    %c0_8 = arith.constant 0 : index
    %5 = vector.load %arg12[%c7_6, %c0_7, %c0_8] : memref<8x1x128xf32, #tpu.memory_space<vmem>>, vector<1x1x128xf32>
    %6 = vector.shape_cast %5 : vector<1x1x128xf32> to vector<1x128xf32>
    %7 = arith.mulf %3, %6 : vector<1x128xf32>
    %cst = arith.constant 5.000000e-02 : f32
    %8 = vector.broadcast %cst : f32 to vector<1x128xf32>
    %9 = arith.mulf %7, %8 : vector<1x128xf32>
    %10 = arith.addf %4, %9 : vector<1x128xf32>
    %cst_9 = arith.constant 0.949999988 : f32
    %11 = vector.broadcast %cst_9 : f32 to vector<1x128xf32>
    %12 = arith.mulf %3, %11 : vector<1x128xf32>
    %13 = arith.mulf %12, %2 : vector<1x128xf32>
    %14 = arith.addf %10, %13 : vector<1x128xf32>
    %c6 = arith.constant 6 : index
    %c0_10 = arith.constant 0 : index
    %15 = vector.load %arg10[%c6, %c0_10] : memref<7x128xf32, #tpu.memory_space<vmem>>, vector<1x128xf32>
    tpu.vector_store %arg10[%c6, %c0_10], %14 {strides = array<i32>} : memref<7x128xf32, #tpu.memory_space<vmem>>, vector<1x128xf32>,
    %c6_11 = arith.constant 6 : index
    %c0_12 = arith.constant 0 : index
    %16 = vector.load %arg3[%c6_11, %c0_12] : memref<8x128xf32, #tpu.memory_space<vmem>>, vector<1x128xf32>
    %c6_13 = arith.constant 6 : index
    %c0_14 = arith.constant 0 : index
    %17 = vector.load %arg2[%c6_13, %c0_14] : memref<8x128xf32, #tpu.memory_space<vmem>>, vector<1x128xf32>
    %c6_15 = arith.constant 6 : index
    %c0_16 = arith.constant 0 : index
    %c0_17 = arith.constant 0 : index
    %18 = vector.load %arg12[%c6_15, %c0_16, %c0_17] : memref<8x1x128xf32, #tpu.memory_space<vmem>>, vector<1x1x128xf32>
    %19 = vector.shape_cast %18 : vector<1x1x128xf32> to vector<1x128xf32>
    %20 = arith.mulf %16, %19 : vector<1x128xf32>
    %cst_18 = arith.constant 5.000000e-02 : f32
    %21 = vector.broadcast %cst_18 : f32 to vector<1x128xf32>
    %22 = arith.mulf %20, %21 : vector<1x128xf32>
    %23 = arith.addf %17, %22 : vector<1x128xf32>
    %cst_19 = arith.constant 0.949999988 : f32
    %24 = vector.broadcast %cst_19 : f32 to vector<1x128xf32>
    %25 = arith.mulf %16, %24 : vector<1x128xf32>
    %26 = arith.mulf %25, %14 : vector<1x128xf32>
    %27 = arith.addf %23, %26 : vector<1x128xf32>
    %c5 = arith.constant 5 : index
    %c0_20 = arith.constant 0 : index
    %28 = vector.load %arg10[%c5, %c0_20] : memref<7x128xf32, #tpu.memory_space<vmem>>, vector<1x128xf32>
    tpu.vector_store %arg10[%c5, %c0_20], %27 {strides = array<i32>} : memref<7x128xf32, #tpu.memory_space<vmem>>, vector<1x128xf32>,
    %c5_21 = arith.constant 5 : index
    %c0_22 = arith.constant 0 : index
    %29 = vector.load %arg3[%c5_21, %c0_22] : memref<8x128xf32, #tpu.memory_space<vmem>>, vector<1x128xf32>
    %c5_23 = arith.constant 5 : index
    %c0_24 = arith.constant 0 : index
    %30 = vector.load %arg2[%c5_23, %c0_24] : memref<8x128xf32, #tpu.memory_space<vmem>>, vector<1x128xf32>
    %c5_25 = arith.constant 5 : index
    %c0_26 = arith.constant 0 : index
    %c0_27 = arith.constant 0 : index
    %31 = vector.load %arg12[%c5_25, %c0_26, %c0_27] : memref<8x1x128xf32, #tpu.memory_space<vmem>>, vector<1x1x128xf32>
    %32 = vector.shape_cast %31 : vector<1x1x128xf32> to vector<1x128xf32>
    %33 = arith.mulf %29, %32 : vector<1x128xf32>
    %cst_28 = arith.constant 5.000000e-02 : f32
    %34 = vector.broadcast %cst_28 : f32 to vector<1x128xf32>
    %35 = arith.mulf %33, %34 : vector<1x128xf32>
    %36 = arith.addf %30, %35 : vector<1x128xf32>
    %cst_29 = arith.constant 0.949999988 : f32
    %37 = vector.broadcast %cst_29 : f32 to vector<1x128xf32>
    %38 = arith.mulf %29, %37 : vector<1x128xf32>
    %39 = arith.mulf %38, %27 : vector<1x128xf32>
    %40 = arith.addf %36, %39 : vector<1x128xf32>
    %c4 = arith.constant 4 : index
    %c0_30 = arith.constant 0 : index
    %41 = vector.load %arg10[%c4, %c0_30] : memref<7x128xf32, #tpu.memory_space<vmem>>, vector<1x128xf32>
    tpu.vector_store %arg10[%c4, %c0_30], %40 {strides = array<i32>} : memref<7x128xf32, #tpu.memory_space<vmem>>, vector<1x128xf32>,
    %c4_31 = arith.constant 4 : index
    %c0_32 = arith.constant 0 : index
    %42 = vector.load %arg3[%c4_31, %c0_32] : memref<8x128xf32, #tpu.memory_space<vmem>>, vector<1x128xf32>
    %c4_33 = arith.constant 4 : index
    %c0_34 = arith.constant 0 : index
    %43 = vector.load %arg2[%c4_33, %c0_34] : memref<8x128xf32, #tpu.memory_space<vmem>>, vector<1x128xf32>
    %c4_35 = arith.constant 4 : index
    %c0_36 = arith.constant 0 : index
    %c0_37 = arith.constant 0 : index
    %44 = vector.load %arg12[%c4_35, %c0_36, %c0_37] : memref<8x1x128xf32, #tpu.memory_space<vmem>>, vector<1x1x128xf32>
    %45 = vector.shape_cast %44 : vector<1x1x128xf32> to vector<1x128xf32>
    %46 = arith.mulf %42, %45 : vector<1x128xf32>
    %cst_38 = arith.constant 5.000000e-02 : f32
    %47 = vector.broadcast %cst_38 : f32 to vector<1x128xf32>
    %48 = arith.mulf %46, %47 : vector<1x128xf32>
    %49 = arith.addf %43, %48 : vector<1x128xf32>
    %cst_39 = arith.constant 0.949999988 : f32
    %50 = vector.broadcast %cst_39 : f32 to vector<1x128xf32>
    %51 = arith.mulf %42, %50 : vector<1x128xf32>
    %52 = arith.mulf %51, %40 : vector<1x128xf32>
    %53 = arith.addf %49, %52 : vector<1x128xf32>
    %c3 = arith.constant 3 : index
    %c0_40 = arith.constant 0 : index
    %54 = vector.load %arg10[%c3, %c0_40] : memref<7x128xf32, #tpu.memory_space<vmem>>, vector<1x128xf32>
    tpu.vector_store %arg10[%c3, %c0_40], %53 {strides = array<i32>} : memref<7x128xf32, #tpu.memory_space<vmem>>, vector<1x128xf32>,
    %c3_41 = arith.constant 3 : index
    %c0_42 = arith.constant 0 : index
    %55 = vector.load %arg3[%c3_41, %c0_42] : memref<8x128xf32, #tpu.memory_space<vmem>>, vector<1x128xf32>
    %c3_43 = arith.constant 3 : index
    %c0_44 = arith.constant 0 : index
    %56 = vector.load %arg2[%c3_43, %c0_44] : memref<8x128xf32, #tpu.memory_space<vmem>>, vector<1x128xf32>
    %c3_45 = arith.constant 3 : index
    %c0_46 = arith.constant 0 : index
    %c0_47 = arith.constant 0 : index
    %57 = vector.load %arg12[%c3_45, %c0_46, %c0_47] : memref<8x1x128xf32, #tpu.memory_space<vmem>>, vector<1x1x128xf32>
    %58 = vector.shape_cast %57 : vector<1x1x128xf32> to vector<1x128xf32>
    %59 = arith.mulf %55, %58 : vector<1x128xf32>
    %cst_48 = arith.constant 5.000000e-02 : f32
    %60 = vector.broadcast %cst_48 : f32 to vector<1x128xf32>
    %61 = arith.mulf %59, %60 : vector<1x128xf32>
    %62 = arith.addf %56, %61 : vector<1x128xf32>
    %cst_49 = arith.constant 0.949999988 : f32
    %63 = vector.broadcast %cst_49 : f32 to vector<1x128xf32>
    %64 = arith.mulf %55, %63 : vector<1x128xf32>
    %65 = arith.mulf %64, %53 : vector<1x128xf32>
    %66 = arith.addf %62, %65 : vector<1x128xf32>
    %c2 = arith.constant 2 : index
    %c0_50 = arith.constant 0 : index
    %67 = vector.load %arg10[%c2, %c0_50] : memref<7x128xf32, #tpu.memory_space<vmem>>, vector<1x128xf32>
    tpu.vector_store %arg10[%c2, %c0_50], %66 {strides = array<i32>} : memref<7x128xf32, #tpu.memory_space<vmem>>, vector<1x128xf32>,
    %c2_51 = arith.constant 2 : index
    %c0_52 = arith.constant 0 : index
    %68 = vector.load %arg3[%c2_51, %c0_52] : memref<8x128xf32, #tpu.memory_space<vmem>>, vector<1x128xf32>
    %c2_53 = arith.constant 2 : index
    %c0_54 = arith.constant 0 : index
    %69 = vector.load %arg2[%c2_53, %c0_54] : memref<8x128xf32, #tpu.memory_space<vmem>>, vector<1x128xf32>
    %c2_55 = arith.constant 2 : index
    %c0_56 = arith.constant 0 : index
    %c0_57 = arith.constant 0 : index
    %70 = vector.load %arg12[%c2_55, %c0_56, %c0_57] : memref<8x1x128xf32, #tpu.memory_space<vmem>>, vector<1x1x128xf32>
    %71 = vector.shape_cast %70 : vector<1x1x128xf32> to vector<1x128xf32>
    %72 = arith.mulf %68, %71 : vector<1x128xf32>
    %cst_58 = arith.constant 5.000000e-02 : f32
    %73 = vector.broadcast %cst_58 : f32 to vector<1x128xf32>
    %74 = arith.mulf %72, %73 : vector<1x128xf32>
    %75 = arith.addf %69, %74 : vector<1x128xf32>
    %cst_59 = arith.constant 0.949999988 : f32
    %76 = vector.broadcast %cst_59 : f32 to vector<1x128xf32>
    %77 = arith.mulf %68, %76 : vector<1x128xf32>
    %78 = arith.mulf %77, %66 : vector<1x128xf32>
    %79 = arith.addf %75, %78 : vector<1x128xf32>
    %c1 = arith.constant 1 : index
    %c0_60 = arith.constant 0 : index
    %80 = vector.load %arg10[%c1, %c0_60] : memref<7x128xf32, #tpu.memory_space<vmem>>, vector<1x128xf32>
    tpu.vector_store %arg10[%c1, %c0_60], %79 {strides = array<i32>} : memref<7x128xf32, #tpu.memory_space<vmem>>, vector<1x128xf32>,
    %c1_61 = arith.constant 1 : index
    %c0_62 = arith.constant 0 : index
    %81 = vector.load %arg3[%c1_61, %c0_62] : memref<8x128xf32, #tpu.memory_space<vmem>>, vector<1x128xf32>
    %c1_63 = arith.constant 1 : index
    %c0_64 = arith.constant 0 : index
    %82 = vector.load %arg2[%c1_63, %c0_64] : memref<8x128xf32, #tpu.memory_space<vmem>>, vector<1x128xf32>
    %c1_65 = arith.constant 1 : index
    %c0_66 = arith.constant 0 : index
    %c0_67 = arith.constant 0 : index
    %83 = vector.load %arg12[%c1_65, %c0_66, %c0_67] : memref<8x1x128xf32, #tpu.memory_space<vmem>>, vector<1x1x128xf32>
    %84 = vector.shape_cast %83 : vector<1x1x128xf32> to vector<1x128xf32>
    %85 = arith.mulf %81, %84 : vector<1x128xf32>
    %cst_68 = arith.constant 5.000000e-02 : f32
    %86 = vector.broadcast %cst_68 : f32 to vector<1x128xf32>
    %87 = arith.mulf %85, %86 : vector<1x128xf32>
    %88 = arith.addf %82, %87 : vector<1x128xf32>
    %cst_69 = arith.constant 0.949999988 : f32
    %89 = vector.broadcast %cst_69 : f32 to vector<1x128xf32>
    %90 = arith.mulf %81, %89 : vector<1x128xf32>
    %91 = arith.mulf %90, %79 : vector<1x128xf32>
    %92 = arith.addf %88, %91 : vector<1x128xf32>
    %c0_70 = arith.constant 0 : index
    %c0_71 = arith.constant 0 : index
    %93 = vector.load %arg10[%c0_70, %c0_71] : memref<7x128xf32, #tpu.memory_space<vmem>>, vector<1x128xf32>
    tpu.vector_store %arg10[%c0_70, %c0_71], %92 {strides = array<i32>} : memref<7x128xf32, #tpu.memory_space<vmem>>, vector<1x128xf32>,
    %cst_72 = arith.constant 1.000000e+00 : f32
    %94 = vector.broadcast %cst_72 : f32 to vector<1x128xf32>
    %c0_73 = arith.constant 0 : index
    %c0_74 = arith.constant 0 : index
    %95 = vector.load %arg11[%c0_73, %c0_74] : memref<8x128xf32, #tpu.memory_space<vmem>>, vector<1x128xf32>
    tpu.vector_store %arg11[%c0_73, %c0_74], %94 {strides = array<i32>} : memref<8x128xf32, #tpu.memory_space<vmem>>, vector<1x128xf32>,
    %c0_75 = arith.constant 0 : index
    %c0_76 = arith.constant 0 : index
    %96 = vector.load %arg3[%c0_75, %c0_76] : memref<8x128xf32, #tpu.memory_space<vmem>>, vector<1x128xf32>
    %97 = arith.mulf %94, %96 : vector<1x128xf32>
    %c1_77 = arith.constant 1 : index
    %c0_78 = arith.constant 0 : index
    %98 = vector.load %arg11[%c1_77, %c0_78] : memref<8x128xf32, #tpu.memory_space<vmem>>, vector<1x128xf32>
    tpu.vector_store %arg11[%c1_77, %c0_78], %97 {strides = array<i32>} : memref<8x128xf32, #tpu.memory_space<vmem>>, vector<1x128xf32>,
    %c1_79 = arith.constant 1 : index
    %c0_80 = arith.constant 0 : index
    %99 = vector.load %arg3[%c1_79, %c0_80] : memref<8x128xf32, #tpu.memory_space<vmem>>, vector<1x128xf32>
    %100 = arith.mulf %97, %99 : vector<1x128xf32>
    %c2_81 = arith.constant 2 : index
    %c0_82 = arith.constant 0 : index
    %101 = vector.load %arg11[%c2_81, %c0_82] : memref<8x128xf32, #tpu.memory_space<vmem>>, vector<1x128xf32>
    tpu.vector_store %arg11[%c2_81, %c0_82], %100 {strides = array<i32>} : memref<8x128xf32, #tpu.memory_space<vmem>>, vector<1x128xf32>,
    %c2_83 = arith.constant 2 : index
    %c0_84 = arith.constant 0 : index
    %102 = vector.load %arg3[%c2_83, %c0_84] : memref<8x128xf32, #tpu.memory_space<vmem>>, vector<1x128xf32>
    %103 = arith.mulf %100, %102 : vector<1x128xf32>
    %c3_85 = arith.constant 3 : index
    %c0_86 = arith.constant 0 : index
    %104 = vector.load %arg11[%c3_85, %c0_86] : memref<8x128xf32, #tpu.memory_space<vmem>>, vector<1x128xf32>
    tpu.vector_store %arg11[%c3_85, %c0_86], %103 {strides = array<i32>} : memref<8x128xf32, #tpu.memory_space<vmem>>, vector<1x128xf32>,
    %c3_87 = arith.constant 3 : index
    %c0_88 = arith.constant 0 : index
    %105 = vector.load %arg3[%c3_87, %c0_88] : memref<8x128xf32, #tpu.memory_space<vmem>>, vector<1x128xf32>
    %106 = arith.mulf %103, %105 : vector<1x128xf32>
    %c4_89 = arith.constant 4 : index
    %c0_90 = arith.constant 0 : index
    %107 = vector.load %arg11[%c4_89, %c0_90] : memref<8x128xf32, #tpu.memory_space<vmem>>, vector<1x128xf32>
    tpu.vector_store %arg11[%c4_89, %c0_90], %106 {strides = array<i32>} : memref<8x128xf32, #tpu.memory_space<vmem>>, vector<1x128xf32>,
    %c4_91 = arith.constant 4 : index
    %c0_92 = arith.constant 0 : index
    %108 = vector.load %arg3[%c4_91, %c0_92] : memref<8x128xf32, #tpu.memory_space<vmem>>, vector<1x128xf32>
    %109 = arith.mulf %106, %108 : vector<1x128xf32>
    %c5_93 = arith.constant 5 : index
    %c0_94 = arith.constant 0 : index
    %110 = vector.load %arg11[%c5_93, %c0_94] : memref<8x128xf32, #tpu.memory_space<vmem>>, vector<1x128xf32>
    tpu.vector_store %arg11[%c5_93, %c0_94], %109 {strides = array<i32>} : memref<8x128xf32, #tpu.memory_space<vmem>>, vector<1x128xf32>,
    %c5_95 = arith.constant 5 : index
    %c0_96 = arith.constant 0 : index
    %111 = vector.load %arg3[%c5_95, %c0_96] : memref<8x128xf32, #tpu.memory_space<vmem>>, vector<1x128xf32>
    %112 = arith.mulf %109, %111 : vector<1x128xf32>
    %c6_97 = arith.constant 6 : index
    %c0_98 = arith.constant 0 : index
    %113 = vector.load %arg11[%c6_97, %c0_98] : memref<8x128xf32, #tpu.memory_space<vmem>>, vector<1x128xf32>
    tpu.vector_store %arg11[%c6_97, %c0_98], %112 {strides = array<i32>} : memref<8x128xf32, #tpu.memory_space<vmem>>, vector<1x128xf32>,
    %c6_99 = arith.constant 6 : index
    %c0_100 = arith.constant 0 : index
    %114 = vector.load %arg3[%c6_99, %c0_100] : memref<8x128xf32, #tpu.memory_space<vmem>>, vector<1x128xf32>
    %115 = arith.mulf %112, %114 : vector<1x128xf32>
    %c7_101 = arith.constant 7 : index
    %c0_102 = arith.constant 0 : index
    %116 = vector.load %arg11[%c7_101, %c0_102] : memref<8x128xf32, #tpu.memory_space<vmem>>, vector<1x128xf32>
    tpu.vector_store %arg11[%c7_101, %c0_102], %115 {strides = array<i32>} : memref<8x128xf32, #tpu.memory_space<vmem>>, vector<1x128xf32>,
    return
  }
  func.func @transform_0(%arg0: i32) -> (i32, i32, i32) {
    %c0_i32 = arith.constant 0 : i32
    %c0_i32_0 = arith.constant 0 : i32
    %c0_i32_1 = arith.constant 0 : i32
    return %c0_i32, %c0_i32_0, %arg0 : i32, i32, i32
  }
  func.func @transform_1(%arg0: i32) -> (i32, i32) {
    %c0_i32 = arith.constant 0 : i32
    %c0_i32_0 = arith.constant 0 : i32
    return %c0_i32, %arg0 : i32, i32
  }
  func.func @transform_2(%arg0: i32) -> (i32, i32) {
    %c0_i32 = arith.constant 0 : i32
    %c0_i32_0 = arith.constant 0 : i32
    return %c0_i32, %arg0 : i32, i32
  }
  func.func @transform_3(%arg0: i32) -> (i32, i32) {
    %c0_i32 = arith.constant 0 : i32
    %c0_i32_0 = arith.constant 0 : i32
    %c0_i32_1 = arith.constant 0 : i32
    return %c0_i32, %c0_i32_0 : i32, i32
  }
  func.func @transform_4(%arg0: i32) -> (i32, i32) {
    %c0_i32 = arith.constant 0 : i32
    %c0_i32_0 = arith.constant 0 : i32
    %c0_i32_1 = arith.constant 0 : i32
    return %c0_i32, %c0_i32_0 : i32, i32
  }
  func.func @transform_5(%arg0: i32) -> (i32, i32) {
    %c0_i32 = arith.constant 0 : i32
    %c0_i32_0 = arith.constant 0 : i32
    %c0_i32_1 = arith.constant 0 : i32
    return %c0_i32, %c0_i32_0 : i32, i32
  }
  func.func @transform_6(%arg0: i32) -> (i32, i32) {
    %c0_i32 = arith.constant 0 : i32
    %c0_i32_0 = arith.constant 0 : i32
    %c0_i32_1 = arith.constant 0 : i32
    return %c0_i32, %c0_i32_0 : i32, i32
  }
  func.func @transform_7(%arg0: i32) -> (i32, i32) {
    %c0_i32 = arith.constant 0 : i32
    %c0_i32_0 = arith.constant 0 : i32
    %c0_i32_1 = arith.constant 0 : i32
    return %c0_i32, %c0_i32_0 : i32, i32
  }
  func.func @transform_8(%arg0: i32) -> (i32, i32) {
    %c0_i32 = arith.constant 0 : i32
    %c0_i32_0 = arith.constant 0 : i32
    %c0_i32_1 = arith.constant 0 : i32
    return %c0_i32, %c0_i32_0 : i32, i32
  }
  func.func @transform_9(%arg0: i32) -> (i32, i32) {
    %c0_i32 = arith.constant 0 : i32
    %c0_i32_0 = arith.constant 0 : i32
    return %c0_i32, %arg0 : i32, i32
  }
  func.func @transform_10(%arg0: i32) -> (i32, i32) {
    %c0_i32 = arith.constant 0 : i32
    %c0_i32_0 = arith.constant 0 : i32
    return %c0_i32, %arg0 : i32, i32
  }
}

</mosaic_0001>

<llo_original>
// kernel: transdreamer_compute_target.1
$region0: #{transdreamer_compute_target.1}
  #allocation0 [shape = 'u32[]', space=smem, size = 0x4, offset = 0x4, fixed_abs, tag = 'smem constant byte address 0x4 - core index']
  #allocation1 [shape = 'u32[144,128]{1,0:T(1,128)}', space=vmem, size = 0x12000, scoped, tag = 'internal scratch']
  #allocation2 [shape = 'f32[8,1,128]{2,1,0:T(1,128)}', space=vmem, size = 0x1000, scoped, tag = 'scratch operand']
  #allocation3 [shape = 'f32[1,1]{1,0:T(1,128)S(6)}', space=smem, size = 0x200, scoped, tag = 'scoped memory for transdreamer_compute_target.1']
  %s0 = inlined_call_operand.vmem [shape: bf16[8,32,256], index: 0, kind: input, shape index: {}]
  %s1 = inlined_call_operand.vmem [shape: f32[8,256], index: 1, kind: input, shape index: {}]
  %s2 = inlined_call_operand.vmem [shape: f32[8,256], index: 2, kind: input, shape index: {}]
  %s3 = inlined_call_operand.vmem [shape: bf16[128,32], index: 3, kind: input, shape index: {}]
  %s4 = inlined_call_operand.vmem [shape: f32[128,1], index: 4, kind: input, shape index: {}]
  %s5 = inlined_call_operand.vmem [shape: bf16[128,128], index: 5, kind: input, shape index: {}]
  %s6 = inlined_call_operand.vmem [shape: f32[128,1], index: 6, kind: input, shape index: {}]
  %s7 = inlined_call_operand.vmem [shape: f32[128,1], index: 7, kind: input, shape index: {}]
  %s8 = inlined_call_operand.<no memory space> [shape: f32[1,1], index: 8, kind: input, shape index: {}]
  %s9 = inlined_call_operand.vmem [shape: f32[7,256], index: 9, kind: output, shape index: {0}]
  %s10 = inlined_call_operand.vmem [shape: f32[8,256], index: 10, kind: output, shape index: {1}]
  %11 = xla_tuple %s9, %s10
  %s12 = sld [smem:[#allocation0]]
  $region125: #{transdreamer_compute_target.1} parent=0
    _
  %s14 = ssub.s32 1, %s12
  %s15 = scalar_select 0, %s14, %s12
  %16 = sst [smem:[#allocation3]] %s8
  $region1: #{transdreamer_compute_target.1} parent=0
    #allocation4 [shape = 'u8[131072]{0}', space=vmem, size = 0x20000, scoped, tag = 'input window, operand 0']
    loop: start=0, step=1, limit=4
    $region2: #{transdreamer_compute_target.1} parent=1 // loop_pre_header
      _
    $region3: #{transdreamer_compute_target.1} parent=1 // loop_header
      %s18 = sphi 0, %s22
      %p19 = scmp.ge.s32.totalorder %s18, 4
      %s28 = sphi 0, %s30
      %s31 = sphi 0, %s28
      %s32 = sphi 0, %s31
      %s48 = sphi 0, %s32
      %s54 = sphi 0, %s56
      %s57 = sphi 0, %s54
      %s58 = sphi 0, %s57
      %s74 = sphi 0, %s58
      %s80 = sphi 0, %s82
      %s83 = sphi 0, %s80
      %s84 = sphi 0, %s83
      %s100 = sphi 0, %s84
      %s104 = sphi 0, %s104
      %s106 = sphi 0, %s104
      %s107 = sphi 0, %s106
      %s121 = sphi 0, %s107
      %s125 = sphi 0, %s125
      %s127 = sphi 0, %s125
      %s128 = sphi 0, %s127
      %s142 = sphi 0, %s128
      %s146 = sphi 0, %s146
      %s148 = sphi 0, %s146
      %s149 = sphi 0, %s148
      %s163 = sphi 0, %s149
      %s167 = sphi 0, %s167
      %s169 = sphi 0, %s167
      %s170 = sphi 0, %s169
      %s184 = sphi 0, %s170
      %s188 = sphi 0, %s188
      %s190 = sphi 0, %s188
      %s191 = sphi 0, %s190
      %s205 = sphi 0, %s191
      %s209 = sphi 0, %s209
      %s211 = sphi 0, %s209
      %s212 = sphi 0, %s211
      %s226 = sphi 0, %s212
      %s232 = sphi 0, %s234
      %s235 = sphi 0, %s232
      %s236 = sphi 0, %s235
      %s252 = sphi 0, %s236
      %s258 = sphi 0, %s260
      %s261 = sphi 0, %s258
      %s262 = sphi 0, %s261
      %s278 = sphi 0, %s262
    $region4: #{transdreamer_compute_target.1} parent=1 // loop_header_branch
      %21 = sbr.rel (%p19) target = $region8
    $region5: #{transdreamer_compute_target.1} parent=1 // loop_body
      %s23 = ssub.s32 %s18, 1
      %s24 = ssub.s32 %s18, 2
      %s25 = sadd.s32 %s18, 1
      %s26 = ssub.s32 %s18, %s25
      %p27 = scmp.eq.s32.totalorder %s26, 0
      %s29 = sadd.s32 %s28, 1
      %s30 = scalar_select %p27, %s28, %s29
      %p33 = pneg %p27
      %p34 = scmp.eq.s32.totalorder %s18, 1
      %p35 = por %p33, %p34
      %p36 = scmp.ne.s32.totalorder %s28, %s31
      %p37 = scmp.eq.s32.totalorder %s18, 0
      %p38 = por %p36, %p37
      %p39 = scmp.ne.s32.totalorder %s28, %s31
      %p40 = scmp.eq.s32.totalorder %s23, 1
      %p41 = por %p39, %p40
      %p42 = scmp.ne.s32.totalorder %s31, %s32
      %p43 = scmp.eq.s32.totalorder %s23, 0
      %p44 = por %p42, %p43
      %p45 = scmp.ne.s32.totalorder %s31, %s32
      %p46 = scmp.eq.s32.totalorder %s24, 1
      %p47 = por %p45, %p46
      %p49 = scmp.ne.s32.totalorder %s32, %s48
      %p50 = scmp.eq.s32.totalorder %s24, 0
      %p51 = por %p49, %p50
      %s52 = ssub.s32 %s18, %s25
      %p53 = scmp.eq.s32.totalorder %s52, 0
      %s55 = sadd.s32 %s54, 1
      %s56 = scalar_select %p53, %s54, %s55
      %p59 = pneg %p53
      %p60 = scmp.eq.s32.totalorder %s18, 1
      %p61 = por %p59, %p60
      %p62 = scmp.ne.s32.totalorder %s54, %s57
      %p63 = scmp.eq.s32.totalorder %s18, 0
      %p64 = por %p62, %p63
      %p65 = scmp.ne.s32.totalorder %s54, %s57
      %p66 = scmp.eq.s32.totalorder %s23, 1
      %p67 = por %p65, %p66
      %p68 = scmp.ne.s32.totalorder %s57, %s58
      %p69 = scmp.eq.s32.totalorder %s23, 0
      %p70 = por %p68, %p69
      %p71 = scmp.ne.s32.totalorder %s57, %s58
      %p72 = scmp.eq.s32.totalorder %s24, 1
      %p73 = por %p71, %p72
      %p75 = scmp.ne.s32.totalorder %s58, %s74
      %p76 = scmp.eq.s32.totalorder %s24, 0
      %p77 = por %p75, %p76
      %s78 = ssub.s32 %s18, %s25
      %p79 = scmp.eq.s32.totalorder %s78, 0
      %s81 = sadd.s32 %s80, 1
      %s82 = scalar_select %p79, %s80, %s81
      %p85 = pneg %p79
      %p86 = scmp.eq.s32.totalorder %s18, 1
      %p87 = por %p85, %p86
      %p88 = scmp.ne.s32.totalorder %s80, %s83
      %p89 = scmp.eq.s32.totalorder %s18, 0
      %p90 = por %p88, %p89
      %p91 = scmp.ne.s32.totalorder %s80, %s83
      %p92 = scmp.eq.s32.totalorder %s23, 1
      %p93 = por %p91, %p92
      %p94 = scmp.ne.s32.totalorder %s83, %s84
      %p95 = scmp.eq.s32.totalorder %s23, 0
      %p96 = por %p94, %p95
      %p97 = scmp.ne.s32.totalorder %s83, %s84
      %p98 = scmp.eq.s32.totalorder %s24, 1
      %p99 = por %p97, %p98
      %p101 = scmp.ne.s32.totalorder %s84, %s100
      %p102 = scmp.eq.s32.totalorder %s24, 0
      %p103 = por %p101, %p102
      %s105 = sadd.s32 %s104, 1
      %p108 = scmp.eq.s32.totalorder %s18, 1
      %p109 = scmp.ne.s32.totalorder %s104, %s106
      %p110 = scmp.eq.s32.totalorder %s18, 0
      %p111 = por %p109, %p110
      %p112 = scmp.ne.s32.totalorder %s104, %s106
      %p113 = scmp.eq.s32.totalorder %s23, 1
      %p114 = por %p112, %p113
      %p115 = scmp.ne.s32.totalorder %s106, %s107
      %p116 = scmp.eq.s32.totalorder %s23, 0
      %p117 = por %p115, %p116
      %p118 = scmp.ne.s32.totalorder %s106, %s107
      %p119 = scmp.eq.s32.totalorder %s24, 1
      %p120 = por %p118, %p119
      %p122 = scmp.ne.s32.totalorder %s107, %s121
      %p123 = scmp.eq.s32.totalorder %s24, 0
      %p124 = por %p122, %p123
      %s126 = sadd.s32 %s125, 1
      %p129 = scmp.eq.s32.totalorder %s18, 1
      %p130 = scmp.ne.s32.totalorder %s125, %s127
      %p131 = scmp.eq.s32.totalorder %s18, 0
      %p132 = por %p130, %p131
      %p133 = scmp.ne.s32.totalorder %s125, %s127
      %p134 = scmp.eq.s32.totalorder %s23, 1
      %p135 = por %p133, %p134
      %p136 = scmp.ne.s32.totalorder %s127, %s128
      %p137 = scmp.eq.s32.totalorder %s23, 0
      %p138 = por %p136, %p137
      %p139 = scmp.ne.s32.totalorder %s127, %s128
      %p140 = scmp.eq.s32.totalorder %s24, 1
      %p141 = por %p139, %p140
      %p143 = scmp.ne.s32.totalorder %s128, %s142
      %p144 = scmp.eq.s32.totalorder %s24, 0
      %p145 = por %p143, %p144
      %s147 = sadd.s32 %s146, 1
      %p150 = scmp.eq.s32.totalorder %s18, 1
      %p151 = scmp.ne.s32.totalorder %s146, %s148
      %p152 = scmp.eq.s32.totalorder %s18, 0
      %p153 = por %p151, %p152
      %p154 = scmp.ne.s32.totalorder %s146, %s148
      %p155 = scmp.eq.s32.totalorder %s23, 1
      %p156 = por %p154, %p155
      %p157 = scmp.ne.s32.totalorder %s148, %s149
      %p158 = scmp.eq.s32.totalorder %s23, 0
      %p159 = por %p157, %p158
      %p160 = scmp.ne.s32.totalorder %s148, %s149
      %p161 = scmp.eq.s32.totalorder %s24, 1
      %p162 = por %p160, %p161
      %p164 = scmp.ne.s32.totalorder %s149, %s163
      %p165 = scmp.eq.s32.totalorder %s24, 0
      %p166 = por %p164, %p165
      %s168 = sadd.s32 %s167, 1
      %p171 = scmp.eq.s32.totalorder %s18, 1
      %p172 = scmp.ne.s32.totalorder %s167, %s169
      %p173 = scmp.eq.s32.totalorder %s18, 0
      %p174 = por %p172, %p173
      %p175 = scmp.ne.s32.totalorder %s167, %s169
      %p176 = scmp.eq.s32.totalorder %s23, 1
      %p177 = por %p175, %p176
      %p178 = scmp.ne.s32.totalorder %s169, %s170
      %p179 = scmp.eq.s32.totalorder %s23, 0
      %p180 = por %p178, %p179
      %p181 = scmp.ne.s32.totalorder %s169, %s170
      %p182 = scmp.eq.s32.totalorder %s24, 1
      %p183 = por %p181, %p182
      %p185 = scmp.ne.s32.totalorder %s170, %s184
      %p186 = scmp.eq.s32.totalorder %s24, 0
      %p187 = por %p185, %p186
      %s189 = sadd.s32 %s188, 1
      %p192 = scmp.eq.s32.totalorder %s18, 1
      %p193 = scmp.ne.s32.totalorder %s188, %s190
      %p194 = scmp.eq.s32.totalorder %s18, 0
      %p195 = por %p193, %p194
      %p196 = scmp.ne.s32.totalorder %s188, %s190
      %p197 = scmp.eq.s32.totalorder %s23, 1
      %p198 = por %p196, %p197
      %p199 = scmp.ne.s32.totalorder %s190, %s191
      %p200 = scmp.eq.s32.totalorder %s23, 0
      %p201 = por %p199, %p200
      %p202 = scmp.ne.s32.totalorder %s190, %s191
      %p203 = scmp.eq.s32.totalorder %s24, 1
      %p204 = por %p202, %p203
      %p206 = scmp.ne.s32.totalorder %s191, %s205
      %p207 = scmp.eq.s32.totalorder %s24, 0
      %p208 = por %p206, %p207
      %s210 = sadd.s32 %s209, 1
      %p213 = scmp.eq.s32.totalorder %s18, 1
      %p214 = scmp.ne.s32.totalorder %s209, %s211
      %p215 = scmp.eq.s32.totalorder %s18, 0
      %p216 = por %p214, %p215
      %p217 = scmp.ne.s32.totalorder %s209, %s211
      %p218 = scmp.eq.s32.totalorder %s23, 1
      %p219 = por %p217, %p218
      %p220 = scmp.ne.s32.totalorder %s211, %s212
      %p221 = scmp.eq.s32.totalorder %s23, 0
      %p222 = por %p220, %p221
      %p223 = scmp.ne.s32.totalorder %s211, %s212
      %p224 = scmp.eq.s32.totalorder %s24, 1
      %p225 = por %p223, %p224
      %p227 = scmp.ne.s32.totalorder %s212, %s226
      %p228 = scmp.eq.s32.totalorder %s24, 0
      %p229 = por %p227, %p228
      %s230 = ssub.s32 %s18, %s25
      %p231 = scmp.eq.s32.totalorder %s230, 0
      %s233 = sadd.s32 %s232, 1
      %s234 = scalar_select %p231, %s232, %s233
      %p237 = pneg %p231
      %p238 = scmp.eq.s32.totalorder %s18, 1
      %p239 = por %p237, %p238
      %p240 = scmp.ne.s32.totalorder %s232, %s235
      %p241 = scmp.eq.s32.totalorder %s18, 0
      %p242 = por %p240, %p241
      %p243 = scmp.ne.s32.totalorder %s232, %s235
      %p244 = scmp.eq.s32.totalorder %s23, 1
      %p245 = por %p243, %p244
      %p246 = scmp.ne.s32.totalorder %s235, %s236
      %p247 = scmp.eq.s32.totalorder %s23, 0
      %p248 = por %p246, %p247
      %p249 = scmp.ne.s32.totalorder %s235, %s236
      %p250 = scmp.eq.s32.totalorder %s24, 1
      %p251 = por %p249, %p250
      %p253 = scmp.ne.s32.totalorder %s236, %s252
      %p254 = scmp.eq.s32.totalorder %s24, 0
      %p255 = por %p253, %p254
      %s256 = ssub.s32 %s18, %s25
      %p257 = scmp.eq.s32.totalorder %s256, 0
      %s259 = sadd.s32 %s258, 1
      %s260 = scalar_select %p257, %s258, %s259
      %p263 = pneg %p257
      %p264 = scmp.eq.s32.totalorder %s18, 1
      %p265 = por %p263, %p264
      %p266 = scmp.ne.s32.totalorder %s258, %s261
      %p267 = scmp.eq.s32.totalorder %s18, 0
      %p268 = por %p266, %p267
      %p269 = scmp.ne.s32.totalorder %s258, %s261
      %p270 = scmp.eq.s32.totalorder %s23, 1
      %p271 = por %p269, %p270
      %p272 = scmp.ne.s32.totalorder %s261, %s262
      %p273 = scmp.eq.s32.totalorder %s23, 0
      %p274 = por %p272, %p273
      %p275 = scmp.ne.s32.totalorder %s261, %s262
      %p276 = scmp.eq.s32.totalorder %s24, 1
      %p277 = por %p275, %p276
      %p279 = scmp.ne.s32.totalorder %s262, %s278
      %p280 = scmp.eq.s32.totalorder %s24, 0
      %p281 = por %p279, %p280
      %p282 = scmp.le.s32.totalorder 1, %s18
      %p283 = scmp.lt.s32.totalorder %s18, 3
      %p284 = pnand %p282, %p283
      %p285 = pneg %p284
      // Predicated region
      $region9: #{transdreamer_compute_target.1} parent=5 // pred_check
        _
      $region10: #{transdreamer_compute_target.1} parent=5 // pred_check_branch
        %287 = sbr.rel (%p284) target = $region12
      $region11: #{transdreamer_compute_target.1} parent=5 // pred_region
        %s288 = ssub.s32 %s18, 1
        // Predicated region
        $region13: #{transdreamer_compute_target.1} parent=11 // pred_check
          %p289 = pneg %p117
        $region14: #{transdreamer_compute_target.1} parent=11 // pred_check_branch
          %291 = sbr.rel (%p289) target = $region16
        $region15: #{transdreamer_compute_target.1} parent=11 // pred_region
          _
        $region16: #{transdreamer_compute_target.1} parent=11 // pred_fallthru
          _
        // Predicated region
        $region17: #{transdreamer_compute_target.1} parent=11 // pred_check
          %p292 = pneg %p138
        $region18: #{transdreamer_compute_target.1} parent=11 // pred_check_branch
          %294 = sbr.rel (%p292) target = $region20
        $region19: #{transdreamer_compute_target.1} parent=11 // pred_region
          _
        $region20: #{transdreamer_compute_target.1} parent=11 // pred_fallthru
          _
        // Predicated region
        $region21: #{transdreamer_compute_target.1} parent=11 // pred_check
          %p295 = pneg %p159
        $region22: #{transdreamer_compute_target.1} parent=11 // pred_check_branch
          %297 = sbr.rel (%p295) target = $region24
        $region23: #{transdreamer_compute_target.1} parent=11 // pred_region
          _
        $region24: #{transdreamer_compute_target.1} parent=11 // pred_fallthru
          _
        // Predicated region
        $region25: #{transdreamer_compute_target.1} parent=11 // pred_check
          %p298 = pneg %p180
        $region26: #{transdreamer_compute_target.1} parent=11 // pred_check_branch
          %300 = sbr.rel (%p298) target = $region28
        $region27: #{transdreamer_compute_target.1} parent=11 // pred_region
          _
        $region28: #{transdreamer_compute_target.1} parent=11 // pred_fallthru
          _
        // Predicated region
        $region29: #{transdreamer_compute_target.1} parent=11 // pred_check
          %p301 = pneg %p201
        $region30: #{transdreamer_compute_target.1} parent=11 // pred_check_branch
          %303 = sbr.rel (%p301) target = $region32
        $region31: #{transdreamer_compute_target.1} parent=11 // pred_region
          _
        $region32: #{transdreamer_compute_target.1} parent=11 // pred_fallthru
          _
        // Predicated region
        $region33: #{transdreamer_compute_target.1} parent=11 // pred_check
          %p304 = pneg %p222
        $region34: #{transdreamer_compute_target.1} parent=11 // pred_check_branch
          %306 = sbr.rel (%p304) target = $region36
        $region35: #{transdreamer_compute_target.1} parent=11 // pred_region
          _
        $region36: #{transdreamer_compute_target.1} parent=11 // pred_fallthru
          _
      $region12: #{transdreamer_compute_target.1} parent=5 // pred_fallthru
        _
      %p307 = scmp.lt.s32.totalorder %s18, 2
      // Predicated region
      $region37: #{transdreamer_compute_target.1} parent=5 // pred_check
        %p308 = pneg %p307
      $region38: #{transdreamer_compute_target.1} parent=5 // pred_check_branch
        %310 = sbr.rel (%p308) target = $region40
      $region39: #{transdreamer_compute_target.1} parent=5 // pred_region
        // Predicated region
        $region41: #{transdreamer_compute_target.1} parent=39 // pred_check
          %p311 = pneg %p38
        $region42: #{transdreamer_compute_target.1} parent=39 // pred_check_branch
          %313 = sbr.rel (%p311) target = $region44
        $region43: #{transdreamer_compute_target.1} parent=39 // pred_region
          %s314 = sand.u32 %s28, 1
          %s315 = sand.u32 %s28, 1
          %s316 = smul.addr %s315, 128
          %s317 = scalar_lea.vmem [#allocation4], %s316
          %s318 = smul.addr %s18, 4
          %s319 = scalar_lea.vmem %s0, %s318
          // Predicated region
          $region45: #{transdreamer_compute_target.1} parent=43 // pred_check
            _
          $region46: #{transdreamer_compute_target.1} parent=43 // pred_check_branch
            %321 = sbr.rel (0) target = $region48
          $region47: #{transdreamer_compute_target.1} parent=43 // pred_region
            // Predicated region
            $region49: #{transdreamer_compute_target.1} parent=47 // pred_check
              _
            $region50: #{transdreamer_compute_target.1} parent=47 // pred_check_branch
              %323 = sbr.rel target = $region52
            $region51: #{transdreamer_compute_target.1} parent=47 // pred_region
              // Predicated region
              $region64: #{transdreamer_compute_target.1} parent=51 // pred_check
                _
              $region65: #{transdreamer_compute_target.1} parent=51 // pred_check_branch
                %400 = sbr.rel (0) target = $region67
              $region66: #{transdreamer_compute_target.1} parent=51 // pred_region
                loop: start=0, step=1, limit=1
                $region68: #{transdreamer_compute_target.1} parent=66 // loop_pre_header
                  _
                $region69: #{transdreamer_compute_target.1} parent=66 // loop_header
                  %s402 = sphi 0, %s406
                  %p403 = scmp.ge.s32.totalorder %s402, 1
                  %s407 = sphi %s319, %s319
                  %s408 = sphi %s317, %s317
                $region70: #{transdreamer_compute_target.1} parent=66 // loop_header_branch
                  %405 = sbr.rel (%p403) target = $region74
                $region71: #{transdreamer_compute_target.1} parent=66 // loop_body
                  _
                $region72: #{transdreamer_compute_target.1} parent=66 // loop_footer
                  %s406 = sadd.s32 1, %s402
                $region73: #{transdreamer_compute_target.1} parent=66 // loop_footer_branch
                  %401 = sbr.rel target = $region69
                $region74: #{transdreamer_compute_target.1} parent=66 // loop_exit
                  _
                loop: start=0, step=1, limit=1
                $region75: #{transdreamer_compute_target.1} parent=66 // loop_pre_header
                  _
                $region76: #{transdreamer_compute_target.1} parent=66 // loop_header
                  %s411 = sphi 0, %s415
                  %p412 = scmp.ge.s32.totalorder %s411, 1
                  %s416 = sphi %s319, %s319
                  %s417 = sphi %s317, %s317
                $region77: #{transdreamer_compute_target.1} parent=66 // loop_header_branch
                  %414 = sbr.rel (%p412) target = $region81
                $region78: #{transdreamer_compute_target.1} parent=66 // loop_body
                  %v418 = vld [vmem:[%s416] sm:$0xf]
                  %419 = vst [vmem:[%s417] sm:$0xf] %v418
                  %v420 = vld [vmem:[%s416 + $0x8] sm:$0xf]
                  %421 = vst [vmem:[%s417 + $0x4] sm:$0xf] %v420
                  %v422 = vld [vmem:[%s416 + $0x10] sm:$0xf]
                  %423 = vst [vmem:[%s417 + $0x8] sm:$0xf] %v422
                  %v424 = vld [vmem:[%s416 + $0x18] sm:$0xf]
                  %425 = vst [vmem:[%s417 + $0xc] sm:$0xf] %v424
                  %v426 = vld [vmem:[%s416 + $0x20] sm:$0xf]
                  %427 = vst [vmem:[%s417 + $0x10] sm:$0xf] %v426
                  %v428 = vld [vmem:[%s416 + $0x28] sm:$0xf]
                  %429 = vst [vmem:[%s417 + $0x14] sm:$0xf] %v428
                  %v430 = vld [vmem:[%s416 + $0x30] sm:$0xf]
                  %431 = vst [vmem:[%s417 + $0x18] sm:$0xf] %v430
                  %v432 = vld [vmem:[%s416 + $0x38] sm:$0xf]
                  %433 = vst [vmem:[%s417 + $0x1c] sm:$0xf] %v432
                  %v434 = vld [vmem:[%s416 + $0x40] sm:$0xf]
                  %435 = vst [vmem:[%s417 + $0x20] sm:$0xf] %v434
                  %v436 = vld [vmem:[%s416 + $0x48] sm:$0xf]
                  %437 = vst [vmem:[%s417 + $0x24] sm:$0xf] %v436
                  %v438 = vld [vmem:[%s416 + $0x50] sm:$0xf]
                  %439 = vst [vmem:[%s417 + $0x28] sm:$0xf] %v438
                  %v440 = vld [vmem:[%s416 + $0x58] sm:$0xf]
                  %441 = vst [vmem:[%s417 + $0x2c] sm:$0xf] %v440
                  %v442 = vld [vmem:[%s416 + $0x60] sm:$0xf]
                  %443 = vst [vmem:[%s417 + $0x30] sm:$0xf] %v442
                  %v444 = vld [vmem:[%s416 + $0x68] sm:$0xf]
                  %445 = vst [vmem:[%s417 + $0x34] sm:$0xf] %v444
                  %v446 = vld [vmem:[%s416 + $0x70] sm:$0xf]
                  %447 = vst [vmem:[%s417 + $0x38] sm:$0xf] %v446
                  %v448 = vld [vmem:[%s416 + $0x78] sm:$0xf]
                  %449 = vst [vmem:[%s417 + $0x3c] sm:$0xf] %v448
                  %v450 = vld [vmem:[%s416 + $0x80] sm:$0xf]
                  %451 = vst [vmem:[%s417 + $0x40] sm:$0xf] %v450
                  %v452 = vld [vmem:[%s416 + $0x88] sm:$0xf]
                  %453 = vst [vmem:[%s417 + $0x44] sm:$0xf] %v452
                  %v454 = vld [vmem:[%s416 + $0x90] sm:$0xf]
                  %455 = vst [vmem:[%s417 + $0x48] sm:$0xf] %v454
                  %v456 = vld [vmem:[%s416 + $0x98] sm:$0xf]
                  %457 = vst [vmem:[%s417 + $0x4c] sm:$0xf] %v456
                  %v458 = vld [vmem:[%s416 + $0xa0] sm:$0xf]
                  %459 = vst [vmem:[%s417 + $0x50] sm:$0xf] %v458
                  %v460 = vld [vmem:[%s416 + $0xa8] sm:$0xf]
                  %461 = vst [vmem:[%s417 + $0x54] sm:$0xf] %v460
                  %v462 = vld [vmem:[%s416 + $0xb0] sm:$0xf]
                  %463 = vst [vmem:[%s417 + $0x58] sm:$0xf] %v462
                  %v464 = vld [vmem:[%s416 + $0xb8] sm:$0xf]
                  %465 = vst [vmem:[%s417 + $0x5c] sm:$0xf] %v464
                  %v466 = vld [vmem:[%s416 + $0xc0] sm:$0xf]
                  %467 = vst [vmem:[%s417 + $0x60] sm:$0xf] %v466
                  %v468 = vld [vmem:[%s416 + $0xc8] sm:$0xf]
                  %469 = vst [vmem:[%s417 + $0x64] sm:$0xf] %v468
                  %v470 = vld [vmem:[%s416 + $0xd0] sm:$0xf]
                  %471 = vst [vmem:[%s417 + $0x68] sm:$0xf] %v470
                  %v472 = vld [vmem:[%s416 + $0xd8] sm:$0xf]
                  %473 = vst [vmem:[%s417 + $0x6c] sm:$0xf] %v472
                  %v474 = vld [vmem:[%s416 + $0xe0] sm:$0xf]
                  %475 = vst [vmem:[%s417 + $0x70] sm:$0xf] %v474
                  %v476 = vld [vmem:[%s416 + $0xe8] sm:$0xf]
                  %477 = vst [vmem:[%s417 + $0x74] sm:$0xf] %v476
                  %v478 = vld [vmem:[%s416 + $0xf0] sm:$0xf]
                  %479 = vst [vmem:[%s417 + $0x78] sm:$0xf] %v478
                  %v480 = vld [vmem:[%s416 + $0xf8] sm:$0xf]
                  %481 = vst [vmem:[%s417 + $0x7c] sm:$0xf] %v480
                $region79: #{transdreamer_compute_target.1} parent=66 // loop_footer
                  %s415 = sadd.s32 1, %s411
                $region80: #{transdreamer_compute_target.1} parent=66 // loop_footer_branch
                  %410 = sbr.rel target = $region76
                $region81: #{transdreamer_compute_target.1} parent=66 // loop_exit
                  _
              $region67: #{transdreamer_compute_target.1} parent=51 // pred_fallthru
                _
            $region52: #{transdreamer_compute_target.1} parent=47 // pred_fallthru
              _
            // Predicated region
            $region53: #{transdreamer_compute_target.1} parent=47 // pred_check
              _
            $region54: #{transdreamer_compute_target.1} parent=47 // pred_check_branch
              %325 = sbr.rel (0) target = $region56
            $region55: #{transdreamer_compute_target.1} parent=47 // pred_region
              loop: start=0, step=1, limit=1
              $region57: #{transdreamer_compute_target.1} parent=55 // loop_pre_header
                _
              $region58: #{transdreamer_compute_target.1} parent=55 // loop_header
                %s328 = sphi 0, %s332
                %p329 = scmp.ge.s32.totalorder %s328, 1
                %s333 = sphi %s319, %s319
                %s334 = sphi %s317, %s317
              $region59: #{transdreamer_compute_target.1} parent=55 // loop_header_branch
                %331 = sbr.rel (%p329) target = $region63
              $region60: #{transdreamer_compute_target.1} parent=55 // loop_body
                %v335 = vld [vmem:[%s333] sm:$0xf]
                %336 = vst [vmem:[%s334] sm:$0xf] %v335
                %v337 = vld [vmem:[%s333 + $0x8] sm:$0xf]
                %338 = vst [vmem:[%s334 + $0x4] sm:$0xf] %v337
                %v339 = vld [vmem:[%s333 + $0x10] sm:$0xf]
                %340 = vst [vmem:[%s334 + $0x8] sm:$0xf] %v339
                %v341 = vld [vmem:[%s333 + $0x18] sm:$0xf]
                %342 = vst [vmem:[%s334 + $0xc] sm:$0xf] %v341
                %v343 = vld [vmem:[%s333 + $0x20] sm:$0xf]
                %344 = vst [vmem:[%s334 + $0x10] sm:$0xf] %v343
                %v345 = vld [vmem:[%s333 + $0x28] sm:$0xf]
                %346 = vst [vmem:[%s334 + $0x14] sm:$0xf] %v345
                %v347 = vld [vmem:[%s333 + $0x30] sm:$0xf]
                %348 = vst [vmem:[%s334 + $0x18] sm:$0xf] %v347
                %v349 = vld [vmem:[%s333 + $0x38] sm:$0xf]
                %350 = vst [vmem:[%s334 + $0x1c] sm:$0xf] %v349
                %v351 = vld [vmem:[%s333 + $0x40] sm:$0xf]
                %352 = vst [vmem:[%s334 + $0x20] sm:$0xf] %v351
                %v353 = vld [vmem:[%s333 + $0x48] sm:$0xf]
                %354 = vst [vmem:[%s334 + $0x24] sm:$0xf] %v353
                %v355 = vld [vmem:[%s333 + $0x50] sm:$0xf]
                %356 = vst [vmem:[%s334 + $0x28] sm:$0xf] %v355
                %v357 = vld [vmem:[%s333 + $0x58] sm:$0xf]
                %358 = vst [vmem:[%s334 + $0x2c] sm:$0xf] %v357
                %v359 = vld [vmem:[%s333 + $0x60] sm:$0xf]
                %360 = vst [vmem:[%s334 + $0x30] sm:$0xf] %v359
                %v361 = vld [vmem:[%s333 + $0x68] sm:$0xf]
                %362 = vst [vmem:[%s334 + $0x34] sm:$0xf] %v361
                %v363 = vld [vmem:[%s333 + $0x70] sm:$0xf]
                %364 = vst [vmem:[%s334 + $0x38] sm:$0xf] %v363
                %v365 = vld [vmem:[%s333 + $0x78] sm:$0xf]
                %366 = vst [vmem:[%s334 + $0x3c] sm:$0xf] %v365
                %v367 = vld [vmem:[%s333 + $0x80] sm:$0xf]
                %368 = vst [vmem:[%s334 + $0x40] sm:$0xf] %v367
                %v369 = vld [vmem:[%s333 + $0x88] sm:$0xf]
                %370 = vst [vmem:[%s334 + $0x44] sm:$0xf] %v369
                %v371 = vld [vmem:[%s333 + $0x90] sm:$0xf]
                %372 = vst [vmem:[%s334 + $0x48] sm:$0xf] %v371
                %v373 = vld [vmem:[%s333 + $0x98] sm:$0xf]
                %374 = vst [vmem:[%s334 + $0x4c] sm:$0xf] %v373
                %v375 = vld [vmem:[%s333 + $0xa0] sm:$0xf]
                %376 = vst [vmem:[%s334 + $0x50] sm:$0xf] %v375
                %v377 = vld [vmem:[%s333 + $0xa8] sm:$0xf]
                %378 = vst [vmem:[%s334 + $0x54] sm:$0xf] %v377
                %v379 = vld [vmem:[%s333 + $0xb0] sm:$0xf]
                %380 = vst [vmem:[%s334 + $0x58] sm:$0xf] %v379
                %v381 = vld [vmem:[%s333 + $0xb8] sm:$0xf]
                %382 = vst [vmem:[%s334 + $0x5c] sm:$0xf] %v381
                %v383 = vld [vmem:[%s333 + $0xc0] sm:$0xf]
                %384 = vst [vmem:[%s334 + $0x60] sm:$0xf] %v383
                %v385 = vld [vmem:[%s333 + $0xc8] sm:$0xf]
                %386 = vst [vmem:[%s334 + $0x64] sm:$0xf] %v385
                %v387 = vld [vmem:[%s333 + $0xd0] sm:$0xf]
                %388 = vst [vmem:[%s334 + $0x68] sm:$0xf] %v387
                %v389 = vld [vmem:[%s333 + $0xd8] sm:$0xf]
                %390 = vst [vmem:[%s334 + $0x6c] sm:$0xf] %v389
                %v391 = vld [vmem:[%s333 + $0xe0] sm:$0xf]
                %392 = vst [vmem:[%s334 + $0x70] sm:$0xf] %v391
                %v393 = vld [vmem:[%s333 + $0xe8] sm:$0xf]
                %394 = vst [vmem:[%s334 + $0x74] sm:$0xf] %v393
                %v395 = vld [vmem:[%s333 + $0xf0] sm:$0xf]
                %396 = vst [vmem:[%s334 + $0x78] sm:$0xf] %v395
                %v397 = vld [vmem:[%s333 + $0xf8] sm:$0xf]
                %398 = vst [vmem:[%s334 + $0x7c] sm:$0xf] %v397
              $region61: #{transdreamer_compute_target.1} parent=55 // loop_footer
                %s332 = sadd.s32 1, %s328
              $region62: #{transdreamer_compute_target.1} parent=55 // loop_footer_branch
                %327 = sbr.rel target = $region58
              $region63: #{transdreamer_compute_target.1} parent=55 // loop_exit
                _
            $region56: #{transdreamer_compute_target.1} parent=47 // pred_fallthru
              _
          $region48: #{transdreamer_compute_target.1} parent=43 // pred_fallthru
            _
          %482 = vnop
        $region44: #{transdreamer_compute_target.1} parent=39 // pred_fallthru
          _
        // Predicated region
        $region82: #{transdreamer_compute_target.1} parent=39 // pred_check
          %p483 = pneg %p64
        $region83: #{transdreamer_compute_target.1} parent=39 // pred_check_branch
          %485 = sbr.rel (%p483) target = $region85
        $region84: #{transdreamer_compute_target.1} parent=39 // pred_region
          %p486 = scmp.lt.s32.totalorder %s18, 1
          %s487 = scalar_select %p486, %s18, 1
          %s488 = smul.addr %s487, 8
          %s489 = scalar_lea.vmem %s1, %s488
        $region85: #{transdreamer_compute_target.1} parent=39 // pred_fallthru
          _
        // Predicated region
        $region86: #{transdreamer_compute_target.1} parent=39 // pred_check
          %p490 = pneg %p90
        $region87: #{transdreamer_compute_target.1} parent=39 // pred_check_branch
          %492 = sbr.rel (%p490) target = $region89
        $region88: #{transdreamer_compute_target.1} parent=39 // pred_region
          %p493 = scmp.lt.s32.totalorder %s18, 1
          %s494 = scalar_select %p493, %s18, 1
          %s495 = smul.addr %s494, 8
          %s496 = scalar_lea.vmem %s2, %s495
        $region89: #{transdreamer_compute_target.1} parent=39 // pred_fallthru
          _
      $region40: #{transdreamer_compute_target.1} parent=5 // pred_fallthru
        _
      %p497 = scmp.le.s32.totalorder 1, %s18
      %p498 = scmp.lt.s32.totalorder %s18, 3
      %p499 = pnand %p497, %p498
      %p500 = pneg %p499
      // Predicated region
      $region90: #{transdreamer_compute_target.1} parent=5 // pred_check
        _
      $region91: #{transdreamer_compute_target.1} parent=5 // pred_check_branch
        %502 = sbr.rel (%p499) target = $region93
      $region92: #{transdreamer_compute_target.1} parent=5 // pred_region
        %s503 = ssub.s32 %s18, 1
        %s504 = sand.u32 %s31, 1
        %s505 = sand.u32 %s31, 1
        %s506 = smul.addr %s505, 128
        %s507 = scalar_lea.vmem [#allocation4], %s506
        // Predicated region
        $region94: #{transdreamer_compute_target.1} parent=92 // pred_check
          %p508 = pneg %p44
        $region95: #{transdreamer_compute_target.1} parent=92 // pred_check_branch
          %510 = sbr.rel (%p508) target = $region97
        $region96: #{transdreamer_compute_target.1} parent=92 // pred_region
          _
        $region97: #{transdreamer_compute_target.1} parent=92 // pred_fallthru
          _
        %s511 = sand.u32 %s31, 1
        %s512 = sand.u32 %s31, 1
        %s513 = smul.addr %s512, 128
        %s514 = scalar_lea.vmem [#allocation4], %s513
        %p515 = pneg %p44
        %p516 = pneg %p41
        %p517 = scmp.lt.s32.totalorder %s23, 1
        %s518 = scalar_select %p517, %s23, 1
        %s519 = smul.addr %s518, 8
        %s520 = scalar_lea.vmem %s1, %s519
        %p521 = pneg %p70
        %p522 = pneg %p67
        %p523 = scmp.lt.s32.totalorder %s23, 1
        %s524 = scalar_select %p523, %s23, 1
        %s525 = smul.addr %s524, 8
        %s526 = scalar_lea.vmem %s2, %s525
        %p527 = pneg %p96
        %p528 = pneg %p93
        %p529 = pneg %p117
        %p530 = pneg %p114
        %p531 = pneg %p138
        %p532 = pneg %p135
        %p533 = pneg %p159
        %p534 = pneg %p156
        %p535 = pneg %p180
        %p536 = pneg %p177
        %p537 = pneg %p201
        %p538 = pneg %p198
        %p539 = pneg %p222
        %p540 = pneg %p219
        %p541 = pneg %p248
        %p542 = pneg %p245
        %p543 = scmp.lt.s32.totalorder %s23, 1
        %s544 = scalar_select %p543, %s23, 1
        %s545 = smul.addr %s544, 8
        %s546 = scalar_lea.vmem %s9, %s545
        %p547 = pneg %p274
        %p548 = pneg %p271
        %p549 = scmp.lt.s32.totalorder %s23, 1
        %s550 = scalar_select %p549, %s23, 1
        %s551 = smul.addr %s550, 8
        %s552 = scalar_lea.vmem %s10, %s551
        %p553 = scmp.lt.s32.totalorder %s23, 1
        %s554 = scalar_select %p553, %s23, 1
        %s555 = smul.addr %s554, 8
        %s556 = scalar_lea.vmem %s1, %s555
        %p557 = scmp.lt.s32.totalorder %s23, 1
        %s558 = scalar_select %p557, %s23, 1
        %s559 = smul.addr %s558, 8
        %s560 = scalar_lea.vmem %s2, %s559
        %p561 = scmp.lt.s32.totalorder %s23, 1
        %s562 = scalar_select %p561, %s23, 1
        %s563 = smul.addr %s562, 8
        %s564 = scalar_lea.vmem %s9, %s563
        %p565 = scmp.lt.s32.totalorder %s23, 1
        %s566 = scalar_select %p565, %s23, 1
        %s567 = smul.addr %s566, 8
        %s568 = scalar_lea.vmem %s10, %s567
        loop: start=0, step=1, limit=7
        $region98: #{transdreamer_compute_target.1} parent=92 // loop_pre_header
          _
        $region99: #{transdreamer_compute_target.1} parent=92 // loop_header
          %s571 = sphi 0, %s575
          %p572 = scmp.ge.s32.totalorder %s571, 7
        $region100: #{transdreamer_compute_target.1} parent=92 // loop_header_branch
          %574 = sbr.rel (%p572) target = $region104
        $region101: #{transdreamer_compute_target.1} parent=92 // loop_body
          %s576 = sadd.s32 %s571, 1
          %s577 = smul.u32 %s576, 4
          %s578 = smul.addr %s577, 4
          %s579 = scalar_lea.vmem %s507, %s578 [#allocation4]
          %v580 = vld [vmem:[%s579] sm:$0xf]
          %v581 = vld [vmem:[%s579 + $0x4] sm:$0xf]
          %v582 = vld [vmem:[%s579 + $0x8] sm:$0xf]
          %v583 = vld [vmem:[%s579 + $0xc] sm:$0xf]
          %v584 = vld [vmem:[%s3] sm:$0xf]
          %v585 = vld [vmem:[%s3 + $0x4] sm:$0xf]
          %v586 = vld [vmem:[%s3 + $0x8] sm:$0xf]
          %v587 = vld [vmem:[%s3 + $0xc] sm:$0xf]
          %v588 = vld [vmem:[%s3 + $0x10] sm:$0xf]
          %v589 = vld [vmem:[%s3 + $0x14] sm:$0xf]
          %v590 = vld [vmem:[%s3 + $0x18] sm:$0xf]
          %v591 = vld [vmem:[%s3 + $0x1c] sm:$0xf]
          %v592 = vld [vmem:[%s3 + $0x20] sm:$0xf]
          %v593 = vld [vmem:[%s3 + $0x24] sm:$0xf]
          %v594 = vld [vmem:[%s3 + $0x28] sm:$0xf]
          %v595 = vld [vmem:[%s3 + $0x2c] sm:$0xf]
          %v596 = vld [vmem:[%s3 + $0x30] sm:$0xf]
          %v597 = vld [vmem:[%s3 + $0x34] sm:$0xf]
          %v598 = vld [vmem:[%s3 + $0x38] sm:$0xf]
          %v599 = vld [vmem:[%s3 + $0x3c] sm:$0xf]
          %v600 = vld [vmem:[%s4] sm:$0xff]
          %v601 = vld [vmem:[%s4 + $0x8] sm:$0xff]
          %v602 = vld [vmem:[%s4 + $0x10] sm:$0xff]
          %v603 = vld [vmem:[%s4 + $0x18] sm:$0xff]
          %v604 = vld [vmem:[%s4 + $0x20] sm:$0xff]
          %v605 = vld [vmem:[%s4 + $0x28] sm:$0xff]
          %v606 = vld [vmem:[%s4 + $0x30] sm:$0xff]
          %v607 = vld [vmem:[%s4 + $0x38] sm:$0xff]
          %v608 = vld [vmem:[%s4 + $0x40] sm:$0xff]
          %v609 = vld [vmem:[%s4 + $0x48] sm:$0xff]
          %v610 = vld [vmem:[%s4 + $0x50] sm:$0xff]
          %v611 = vld [vmem:[%s4 + $0x58] sm:$0xff]
          %v612 = vld [vmem:[%s4 + $0x60] sm:$0xff]
          %v613 = vld [vmem:[%s4 + $0x68] sm:$0xff]
          %v614 = vld [vmem:[%s4 + $0x70] sm:$0xff]
          %v615 = vld [vmem:[%s4 + $0x78] sm:$0xff]
          %617 = vset.pattern.permute.xlu0 0
          %618 = vperm.xlu0 %617, %v600
          %v619 = vpop.permute.xlu0 %618
          %622 = vset.pattern.permute.xlu0 0
          %623 = vperm.xlu0 %622, %v601
          %v624 = vpop.permute.xlu0 %623
          %627 = vset.pattern.permute.xlu0 0
          %628 = vperm.xlu0 %627, %v602
          %v629 = vpop.permute.xlu0 %628
          %632 = vset.pattern.permute.xlu0 0
          %633 = vperm.xlu0 %632, %v603
          %v634 = vpop.permute.xlu0 %633
          %637 = vset.pattern.permute.xlu0 0
          %638 = vperm.xlu0 %637, %v604
          %v639 = vpop.permute.xlu0 %638
          %642 = vset.pattern.permute.xlu0 0
          %643 = vperm.xlu0 %642, %v605
          %v644 = vpop.permute.xlu0 %643
          %647 = vset.pattern.permute.xlu0 0
          %648 = vperm.xlu0 %647, %v606
          %v649 = vpop.permute.xlu0 %648
          %652 = vset.pattern.permute.xlu0 0
          %653 = vperm.xlu0 %652, %v607
          %v654 = vpop.permute.xlu0 %653
          %657 = vset.pattern.permute.xlu0 0
          %658 = vperm.xlu0 %657, %v608
          %v659 = vpop.permute.xlu0 %658
          %662 = vset.pattern.permute.xlu0 0
          %663 = vperm.xlu0 %662, %v609
          %v664 = vpop.permute.xlu0 %663
          %667 = vset.pattern.permute.xlu0 0
          %668 = vperm.xlu0 %667, %v610
          %v669 = vpop.permute.xlu0 %668
          %672 = vset.pattern.permute.xlu0 0
          %673 = vperm.xlu0 %672, %v611
          %v674 = vpop.permute.xlu0 %673
          %677 = vset.pattern.permute.xlu0 0
          %678 = vperm.xlu0 %677, %v612
          %v679 = vpop.permute.xlu0 %678
          %682 = vset.pattern.permute.xlu0 0
          %683 = vperm.xlu0 %682, %v613
          %v684 = vpop.permute.xlu0 %683
          %687 = vset.pattern.permute.xlu0 0
          %688 = vperm.xlu0 %687, %v614
          %v689 = vpop.permute.xlu0 %688
          %692 = vset.pattern.permute.xlu0 0
          %693 = vperm.xlu0 %692, %v615
          %v694 = vpop.permute.xlu0 %693
          %v712 = vunpack.c.l.b16 %v584
          %v713 = vunpack.c.l.b16 %v585
          %v714 = vunpack.c.l.b16 %v586
          %v715 = vunpack.c.l.b16 %v587
          %v716 = vunpack.c.l.b16 %v588
          %v717 = vunpack.c.l.b16 %v589
          %v718 = vunpack.c.l.b16 %v590
          %v719 = vunpack.c.l.b16 %v591
          %v720 = vunpack.c.l.b16 %v592
          %v721 = vunpack.c.l.b16 %v593
          %v722 = vunpack.c.l.b16 %v594
          %v723 = vunpack.c.l.b16 %v595
          %v724 = vunpack.c.l.b16 %v596
          %v725 = vunpack.c.l.b16 %v597
          %v726 = vunpack.c.l.b16 %v598
          %v727 = vunpack.c.l.b16 %v599
          %v728 = vpack.c.b16 %v713, %v712
          %v729 = vpack.c.b16 %v715, %v714
          %v730 = vpack.c.b16 %v717, %v716
          %v731 = vpack.c.b16 %v719, %v718
          %v732 = vpack.c.b16 %v721, %v720
          %v733 = vpack.c.b16 %v723, %v722
          %v734 = vpack.c.b16 %v725, %v724
          %v735 = vpack.c.b16 %v727, %v726
          %v740 = vunpack.c.l.b16 %v580
          %v741 = vunpack.c.l.b16 %v581
          %v742 = vunpack.c.l.b16 %v582
          %v743 = vunpack.c.l.b16 %v583
          %v744 = vpack.c.b16 %v741, %v740
          %v745 = vpack.c.b16 %v743, %v742
          %vm748 = vcmask 261120
          %v750 = vsel %vm748, %v728, 0
          %v753 = vsel %vm748, %v729, 0
          %v756 = vsel %vm748, %v730, 0
          %v759 = vsel %vm748, %v731, 0
          %v762 = vsel %vm748, %v732, 0
          %v765 = vsel %vm748, %v733, 0
          %v768 = vsel %vm748, %v734, 0
          %v771 = vsel %vm748, %v735, 0
          %773 = vmatprep.subr.bf16.mxu0 0
          %774 = vmatpush1.bf16.msra.mxu0 %v744
          %775 = vmatprep.subr.bf16.mxu0 0
          %776 = vmatpush1.bf16.msra.mxu0 %v745
          %777 = vmatprep.subr.bf16.mxu0 0
          %778 = vmatpush1.bf16.msra.mxu0 0
          %779 = vmatprep.subr.bf16.mxu0 0
          %780 = vmatpush1.bf16.msra.mxu0 0
          %781 = vmatprep.subr.bf16.mxu0 0
          %782 = vmatpush1.bf16.msra.mxu0 0
          %783 = vmatprep.subr.bf16.mxu0 0
          %784 = vmatpush1.bf16.msra.mxu0 0
          %785 = vmatprep.subr.bf16.mxu0 0
          %786 = vmatpush1.bf16.msra.mxu0 0
          %787 = vmatprep.subr.bf16.mxu0 0
          %788 = vmatpush1.bf16.msra.mxu0 0
          %789 = vmatprep.subr.bf16.mxu0 0
          %790 = vmatpush1.bf16.msra.mxu0 0
          %791 = vmatprep.subr.bf16.mxu0 0
          %792 = vmatpush1.bf16.msra.mxu0 0
          %793 = vmatprep.subr.bf16.mxu0 0
          %794 = vmatpush1.bf16.msra.mxu0 0
          %795 = vmatprep.subr.bf16.mxu0 0
          %796 = vmatpush1.bf16.msra.mxu0 0
          %797 = vmatprep.subr.bf16.mxu0 0
          %798 = vmatpush1.bf16.msra.mxu0 0
          %799 = vmatprep.subr.bf16.mxu0 0
          %800 = vmatpush1.bf16.msra.mxu0 0
          %801 = vmatprep.subr.bf16.mxu0 0
          %802 = vmatpush1.bf16.msra.mxu0 0
          %803 = vmatprep.subr.bf16.mxu0 0
          %804 = vmatpush1.bf16.msra.mxu0 0
          %805 = vmatprep.mubr.bf16.mxu0 0
          %806 = vmatmul.mubr.bf16.gmra.mrb[0].mxu0 %v750
          %v807 = vpop.f32.mrb[0].mxu0
          %v808 = vadd.f32 %v619, %v807
          %v809 = vpop.f32.mrb[0].mxu0
          %v810 = vpop.f32.mrb[0].mxu0
          %v811 = vadd.f32 %v624, %v810
          %v812 = vpop.f32.mrb[0].mxu0
          %813 = vmatprep.mubr.bf16.mxu0 0
          %814 = vmatmul.mubr.bf16.gmra.mrb[0].mxu0 %v753
          %v815 = vpop.f32.mrb[0].mxu0
          %v816 = vadd.f32 %v629, %v815
          %v817 = vpop.f32.mrb[0].mxu0
          %v818 = vpop.f32.mrb[0].mxu0
          %v819 = vadd.f32 %v634, %v818
          %v820 = vpop.f32.mrb[0].mxu0
          %821 = vmatprep.mubr.bf16.mxu0 0
          %822 = vmatmul.mubr.bf16.gmra.mrb[0].mxu0 %v756
          %v823 = vpop.f32.mrb[0].mxu0
          %v824 = vadd.f32 %v639, %v823
          %v825 = vpop.f32.mrb[0].mxu0
          %v826 = vpop.f32.mrb[0].mxu0
          %v827 = vadd.f32 %v644, %v826
          %v828 = vpop.f32.mrb[0].mxu0
          %829 = vmatprep.mubr.bf16.mxu0 0
          %830 = vmatmul.mubr.bf16.gmra.mrb[0].mxu0 %v759
          %v831 = vpop.f32.mrb[0].mxu0
          %v832 = vadd.f32 %v649, %v831
          %v833 = vpop.f32.mrb[0].mxu0
          %v834 = vpop.f32.mrb[0].mxu0
          %v835 = vadd.f32 %v654, %v834
          %v836 = vpop.f32.mrb[0].mxu0
          %837 = vmatprep.mubr.bf16.mxu0 0
          %838 = vmatmul.mubr.bf16.gmra.mrb[0].mxu0 %v762
          %v839 = vpop.f32.mrb[0].mxu0
          %v840 = vadd.f32 %v659, %v839
          %v841 = vpop.f32.mrb[0].mxu0
          %v842 = vpop.f32.mrb[0].mxu0
          %v843 = vadd.f32 %v664, %v842
          %v844 = vpop.f32.mrb[0].mxu0
          %845 = vmatprep.mubr.bf16.mxu0 0
          %846 = vmatmul.mubr.bf16.gmra.mrb[0].mxu0 %v765
          %v847 = vpop.f32.mrb[0].mxu0
          %v848 = vadd.f32 %v669, %v847
          %v849 = vpop.f32.mrb[0].mxu0
          %v850 = vpop.f32.mrb[0].mxu0
          %v851 = vadd.f32 %v674, %v850
          %v852 = vpop.f32.mrb[0].mxu0
          %853 = vmatprep.mubr.bf16.mxu0 0
          %854 = vmatmul.mubr.bf16.gmra.mrb[0].mxu0 %v768
          %v855 = vpop.f32.mrb[0].mxu0
          %v856 = vadd.f32 %v679, %v855
          %v857 = vpop.f32.mrb[0].mxu0
          %v858 = vpop.f32.mrb[0].mxu0
          %v859 = vadd.f32 %v684, %v858
          %v860 = vpop.f32.mrb[0].mxu0
          %861 = vmatprep.mubr.bf16.mxu0 0
          %862 = vmatmul.mubr.bf16.gmra.mrb[0].mxu0 %v771
          %v863 = vpop.f32.mrb[0].mxu0
          %v864 = vadd.f32 %v689, %v863
          %v865 = vpop.f32.mrb[0].mxu0
          %v866 = vpop.f32.mrb[0].mxu0
          %v867 = vadd.f32 %v694, %v866
          %v868 = vpop.f32.mrb[0].mxu0
          %869 = vdwg.mxu0
          %vm870 = vcmp.gt.f32.partialorder %v808, 0.0
          %vm871 = vcmp.gt.f32.partialorder %v811, 0.0
          %vm872 = vcmp.gt.f32.partialorder %v816, 0.0
          %vm873 = vcmp.gt.f32.partialorder %v819, 0.0
          %vm874 = vcmp.gt.f32.partialorder %v824, 0.0
          %vm875 = vcmp.gt.f32.partialorder %v827, 0.0
          %vm876 = vcmp.gt.f32.partialorder %v832, 0.0
          %vm877 = vcmp.gt.f32.partialorder %v835, 0.0
          %vm878 = vcmp.gt.f32.partialorder %v840, 0.0
          %vm879 = vcmp.gt.f32.partialorder %v843, 0.0
          %vm880 = vcmp.gt.f32.partialorder %v848, 0.0
          %vm881 = vcmp.gt.f32.partialorder %v851, 0.0
          %vm882 = vcmp.gt.f32.partialorder %v856, 0.0
          %vm883 = vcmp.gt.f32.partialorder %v859, 0.0
          %vm884 = vcmp.gt.f32.partialorder %v864, 0.0
          %vm885 = vcmp.gt.f32.partialorder %v867, 0.0
          %v886 = vmin.f32 %v808, 0.0
          %v887 = vmin.f32 %v811, 0.0
          %v888 = vmin.f32 %v816, 0.0
          %v889 = vmin.f32 %v819, 0.0
          %v890 = vmin.f32 %v824, 0.0
          %v891 = vmin.f32 %v827, 0.0
          %v892 = vmin.f32 %v832, 0.0
          %v893 = vmin.f32 %v835, 0.0
          %v894 = vmin.f32 %v840, 0.0
          %v895 = vmin.f32 %v843, 0.0
          %v896 = vmin.f32 %v848, 0.0
          %v897 = vmin.f32 %v851, 0.0
          %v898 = vmin.f32 %v856, 0.0
          %v899 = vmin.f32 %v859, 0.0
          %v900 = vmin.f32 %v864, 0.0
          %v901 = vmin.f32 %v867, 0.0
          %v902 = vmul.f32 %v886, 1.442695
          %v903 = vpow.pop %v902
          %v904 = vmul.f32 %v887, 1.442695
          %v905 = vpow.pop %v904
          %v906 = vmul.f32 %v888, 1.442695
          %v907 = vpow.pop %v906
          %v908 = vmul.f32 %v889, 1.442695
          %v909 = vpow.pop %v908
          %v910 = vmul.f32 %v890, 1.442695
          %v911 = vpow.pop %v910
          %v912 = vmul.f32 %v891, 1.442695
          %v913 = vpow.pop %v912
          %v914 = vmul.f32 %v892, 1.442695
          %v915 = vpow.pop %v914
          %v916 = vmul.f32 %v893, 1.442695
          %v917 = vpow.pop %v916
          %v918 = vmul.f32 %v894, 1.442695
          %v919 = vpow.pop %v918
          %v920 = vmul.f32 %v895, 1.442695
          %v921 = vpow.pop %v920
          %v922 = vmul.f32 %v896, 1.442695
          %v923 = vpow.pop %v922
          %v924 = vmul.f32 %v897, 1.442695
          %v925 = vpow.pop %v924
          %v926 = vmul.f32 %v898, 1.442695
          %v927 = vpow.pop %v926
          %v928 = vmul.f32 %v899, 1.442695
          %v929 = vpow.pop %v928
          %v930 = vmul.f32 %v900, 1.442695
          %v931 = vpow.pop %v930
          %v932 = vmul.f32 %v901, 1.442695
          %v933 = vpow.pop %v932
          %v934 = vsub.f32 %v903, 1.0
          %v935 = vsub.f32 %v905, 1.0
          %v936 = vsub.f32 %v907, 1.0
          %v937 = vsub.f32 %v909, 1.0
          %v938 = vsub.f32 %v911, 1.0
          %v939 = vsub.f32 %v913, 1.0
          %v940 = vsub.f32 %v915, 1.0
          %v941 = vsub.f32 %v917, 1.0
          %v942 = vsub.f32 %v919, 1.0
          %v943 = vsub.f32 %v921, 1.0
          %v944 = vsub.f32 %v923, 1.0
          %v945 = vsub.f32 %v925, 1.0
          %v946 = vsub.f32 %v927, 1.0
          %v947 = vsub.f32 %v929, 1.0
          %v948 = vsub.f32 %v931, 1.0
          %v949 = vsub.f32 %v933, 1.0
          %v950 = vsel %vm870, %v808, %v934
          %v951 = vsel %vm871, %v811, %v935
          %v952 = vsel %vm872, %v816, %v936
          %v953 = vsel %vm873, %v819, %v937
          %v954 = vsel %vm874, %v824, %v938
          %v955 = vsel %vm875, %v827, %v939
          %v956 = vsel %vm876, %v832, %v940
          %v957 = vsel %vm877, %v835, %v941
          %v958 = vsel %vm878, %v840, %v942
          %v959 = vsel %vm879, %v843, %v943
          %v960 = vsel %vm880, %v848, %v944
          %v961 = vsel %vm881, %v851, %v945
          %v962 = vsel %vm882, %v856, %v946
          %v963 = vsel %vm883, %v859, %v947
          %v964 = vsel %vm884, %v864, %v948
          %v965 = vsel %vm885, %v867, %v949
          %v966 = vpack.c.bf16 %v951, %v950
          %v967 = vpack.c.bf16 %v953, %v952
          %v968 = vpack.c.bf16 %v955, %v954
          %v969 = vpack.c.bf16 %v957, %v956
          %v970 = vpack.c.bf16 %v959, %v958
          %v971 = vpack.c.bf16 %v961, %v960
          %v972 = vpack.c.bf16 %v963, %v962
          %v973 = vpack.c.bf16 %v965, %v964
          %v974 = vld [vmem:[%s5] sm:$0xf]
          %v975 = vld [vmem:[%s5 + $0x4] sm:$0xf]
          %v976 = vld [vmem:[%s5 + $0x8] sm:$0xf]
          %v977 = vld [vmem:[%s5 + $0xc] sm:$0xf]
          %v978 = vld [vmem:[%s5 + $0x10] sm:$0xf]
          %v979 = vld [vmem:[%s5 + $0x14] sm:$0xf]
          %v980 = vld [vmem:[%s5 + $0x18] sm:$0xf]
          %v981 = vld [vmem:[%s5 + $0x1c] sm:$0xf]
          %v982 = vld [vmem:[%s5 + $0x20] sm:$0xf]
          %v983 = vld [vmem:[%s5 + $0x24] sm:$0xf]
          %v984 = vld [vmem:[%s5 + $0x28] sm:$0xf]
          %v985 = vld [vmem:[%s5 + $0x2c] sm:$0xf]
          %v986 = vld [vmem:[%s5 + $0x30] sm:$0xf]
          %v987 = vld [vmem:[%s5 + $0x34] sm:$0xf]
          %v988 = vld [vmem:[%s5 + $0x38] sm:$0xf]
          %v989 = vld [vmem:[%s5 + $0x3c] sm:$0xf]
          %v990 = vld [vmem:[%s6] sm:$0xff]
          %v991 = vld [vmem:[%s6 + $0x8] sm:$0xff]
          %v992 = vld [vmem:[%s6 + $0x10] sm:$0xff]
          %v993 = vld [vmem:[%s6 + $0x18] sm:$0xff]
          %v994 = vld [vmem:[%s6 + $0x20] sm:$0xff]
          %v995 = vld [vmem:[%s6 + $0x28] sm:$0xff]
          %v996 = vld [vmem:[%s6 + $0x30] sm:$0xff]
          %v997 = vld [vmem:[%s6 + $0x38] sm:$0xff]
          %v998 = vld [vmem:[%s6 + $0x40] sm:$0xff]
          %v999 = vld [vmem:[%s6 + $0x48] sm:$0xff]
          %v1000 = vld [vmem:[%s6 + $0x50] sm:$0xff]
          %v1001 = vld [vmem:[%s6 + $0x58] sm:$0xff]
          %v1002 = vld [vmem:[%s6 + $0x60] sm:$0xff]
          %v1003 = vld [vmem:[%s6 + $0x68] sm:$0xff]
          %v1004 = vld [vmem:[%s6 + $0x70] sm:$0xff]
          %v1005 = vld [vmem:[%s6 + $0x78] sm:$0xff]
          %1007 = vset.pattern.permute.xlu0 0
          %1008 = vperm.xlu0 %1007, %v990
          %v1009 = vpop.permute.xlu0 %1008
          %1012 = vset.pattern.permute.xlu0 0
          %1013 = vperm.xlu0 %1012, %v991
          %v1014 = vpop.permute.xlu0 %1013
          %1017 = vset.pattern.permute.xlu0 0
          %1018 = vperm.xlu0 %1017, %v992
          %v1019 = vpop.permute.xlu0 %1018
          %1022 = vset.pattern.permute.xlu0 0
          %1023 = vperm.xlu0 %1022, %v993
          %v1024 = vpop.permute.xlu0 %1023
          %1027 = vset.pattern.permute.xlu0 0
          %1028 = vperm.xlu0 %1027, %v994
          %v1029 = vpop.permute.xlu0 %1028
          %1032 = vset.pattern.permute.xlu0 0
          %1033 = vperm.xlu0 %1032, %v995
          %v1034 = vpop.permute.xlu0 %1033
          %1037 = vset.pattern.permute.xlu0 0
          %1038 = vperm.xlu0 %1037, %v996
          %v1039 = vpop.permute.xlu0 %1038
          %1042 = vset.pattern.permute.xlu0 0
          %1043 = vperm.xlu0 %1042, %v997
          %v1044 = vpop.permute.xlu0 %1043
          %1047 = vset.pattern.permute.xlu0 0
          %1048 = vperm.xlu0 %1047, %v998
          %v1049 = vpop.permute.xlu0 %1048
          %1052 = vset.pattern.permute.xlu0 0
          %1053 = vperm.xlu0 %1052, %v999
          %v1054 = vpop.permute.xlu0 %1053
          %1057 = vset.pattern.permute.xlu0 0
          %1058 = vperm.xlu0 %1057, %v1000
          %v1059 = vpop.permute.xlu0 %1058
          %1062 = vset.pattern.permute.xlu0 0
          %1063 = vperm.xlu0 %1062, %v1001
          %v1064 = vpop.permute.xlu0 %1063
          %1067 = vset.pattern.permute.xlu0 0
          %1068 = vperm.xlu0 %1067, %v1002
          %v1069 = vpop.permute.xlu0 %1068
          %1072 = vset.pattern.permute.xlu0 0
          %1073 = vperm.xlu0 %1072, %v1003
          %v1074 = vpop.permute.xlu0 %1073
          %1077 = vset.pattern.permute.xlu0 0
          %1078 = vperm.xlu0 %1077, %v1004
          %v1079 = vpop.permute.xlu0 %1078
          %1082 = vset.pattern.permute.xlu0 0
          %1083 = vperm.xlu0 %1082, %v1005
          %v1084 = vpop.permute.xlu0 %1083
          %v1102 = vunpack.c.l.b16 %v974
          %v1103 = vunpack.c.l.b16 %v975
          %v1104 = vunpack.c.l.b16 %v976
          %v1105 = vunpack.c.l.b16 %v977
          %v1106 = vunpack.c.l.b16 %v978
          %v1107 = vunpack.c.l.b16 %v979
          %v1108 = vunpack.c.l.b16 %v980
          %v1109 = vunpack.c.l.b16 %v981
          %v1110 = vunpack.c.l.b16 %v982
          %v1111 = vunpack.c.l.b16 %v983
          %v1112 = vunpack.c.l.b16 %v984
          %v1113 = vunpack.c.l.b16 %v985
          %v1114 = vunpack.c.l.b16 %v986
          %v1115 = vunpack.c.l.b16 %v987
          %v1116 = vunpack.c.l.b16 %v988
          %v1117 = vunpack.c.l.b16 %v989
          %v1118 = vpack.c.b16 %v1103, %v1102
          %v1119 = vpack.c.b16 %v1105, %v1104
          %v1120 = vpack.c.b16 %v1107, %v1106
          %v1121 = vpack.c.b16 %v1109, %v1108
          %v1122 = vpack.c.b16 %v1111, %v1110
          %v1123 = vpack.c.b16 %v1113, %v1112
          %v1124 = vpack.c.b16 %v1115, %v1114
          %v1125 = vpack.c.b16 %v1117, %v1116
          %1134 = vmatprep.subr.bf16.mxu0 0
          %1135 = vmatpush1.bf16.msra.mxu0 %v966
          %1136 = vmatprep.subr.bf16.mxu0 0
          %1137 = vmatpush1.bf16.msra.mxu0 %v967
          %1138 = vmatprep.subr.bf16.mxu0 0
          %1139 = vmatpush1.bf16.msra.mxu0 %v968
          %1140 = vmatprep.subr.bf16.mxu0 0
          %1141 = vmatpush1.bf16.msra.mxu0 %v969
          %1142 = vmatprep.subr.bf16.mxu0 0
          %1143 = vmatpush1.bf16.msra.mxu0 %v970
          %1144 = vmatprep.subr.bf16.mxu0 0
          %1145 = vmatpush1.bf16.msra.mxu0 %v971
          %1146 = vmatprep.subr.bf16.mxu0 0
          %1147 = vmatpush1.bf16.msra.mxu0 %v972
          %1148 = vmatprep.subr.bf16.mxu0 0
          %1149 = vmatpush1.bf16.msra.mxu0 %v973
          %1150 = vmatprep.subr.bf16.mxu0 0
          %1151 = vmatpush1.bf16.msra.mxu0 0
          %1152 = vmatprep.subr.bf16.mxu0 0
          %1153 = vmatpush1.bf16.msra.mxu0 0
          %1154 = vmatprep.subr.bf16.mxu0 0
          %1155 = vmatpush1.bf16.msra.mxu0 0
          %1156 = vmatprep.subr.bf16.mxu0 0
          %1157 = vmatpush1.bf16.msra.mxu0 0
          %1158 = vmatprep.subr.bf16.mxu0 0
          %1159 = vmatpush1.bf16.msra.mxu0 0
          %1160 = vmatprep.subr.bf16.mxu0 0
          %1161 = vmatpush1.bf16.msra.mxu0 0
          %1162 = vmatprep.subr.bf16.mxu0 0
          %1163 = vmatpush1.bf16.msra.mxu0 0
          %1164 = vmatprep.subr.bf16.mxu0 0
          %1165 = vmatpush1.bf16.msra.mxu0 0
          %1166 = vmatprep.mubr.bf16.mxu0 0
          %1167 = vmatmul.mubr.bf16.gmra.mrb[0].mxu0 %v1118
          %v1168 = vpop.f32.mrb[0].mxu0
          %v1169 = vadd.f32 %v1009, %v1168
          %v1170 = vpop.f32.mrb[0].mxu0
          %v1171 = vpop.f32.mrb[0].mxu0
          %v1172 = vadd.f32 %v1014, %v1171
          %v1173 = vpop.f32.mrb[0].mxu0
          %1174 = vmatprep.mubr.bf16.mxu0 0
          %1175 = vmatmul.mubr.bf16.gmra.mrb[0].mxu0 %v1119
          %v1176 = vpop.f32.mrb[0].mxu0
          %v1177 = vadd.f32 %v1019, %v1176
          %v1178 = vpop.f32.mrb[0].mxu0
          %v1179 = vpop.f32.mrb[0].mxu0
          %v1180 = vadd.f32 %v1024, %v1179
          %v1181 = vpop.f32.mrb[0].mxu0
          %1182 = vmatprep.mubr.bf16.mxu0 0
          %1183 = vmatmul.mubr.bf16.gmra.mrb[0].mxu0 %v1120
          %v1184 = vpop.f32.mrb[0].mxu0
          %v1185 = vadd.f32 %v1029, %v1184
          %v1186 = vpop.f32.mrb[0].mxu0
          %v1187 = vpop.f32.mrb[0].mxu0
          %v1188 = vadd.f32 %v1034, %v1187
          %v1189 = vpop.f32.mrb[0].mxu0
          %1190 = vmatprep.mubr.bf16.mxu0 0
          %1191 = vmatmul.mubr.bf16.gmra.mrb[0].mxu0 %v1121
          %v1192 = vpop.f32.mrb[0].mxu0
          %v1193 = vadd.f32 %v1039, %v1192
          %v1194 = vpop.f32.mrb[0].mxu0
          %v1195 = vpop.f32.mrb[0].mxu0
          %v1196 = vadd.f32 %v1044, %v1195
          %v1197 = vpop.f32.mrb[0].mxu0
          %1198 = vmatprep.mubr.bf16.mxu0 0
          %1199 = vmatmul.mubr.bf16.gmra.mrb[0].mxu0 %v1122
          %v1200 = vpop.f32.mrb[0].mxu0
          %v1201 = vadd.f32 %v1049, %v1200
          %v1202 = vpop.f32.mrb[0].mxu0
          %v1203 = vpop.f32.mrb[0].mxu0
          %v1204 = vadd.f32 %v1054, %v1203
          %v1205 = vpop.f32.mrb[0].mxu0
          %1206 = vmatprep.mubr.bf16.mxu0 0
          %1207 = vmatmul.mubr.bf16.gmra.mrb[0].mxu0 %v1123
          %v1208 = vpop.f32.mrb[0].mxu0
          %v1209 = vadd.f32 %v1059, %v1208
          %v1210 = vpop.f32.mrb[0].mxu0
          %v1211 = vpop.f32.mrb[0].mxu0
          %v1212 = vadd.f32 %v1064, %v1211
          %v1213 = vpop.f32.mrb[0].mxu0
          %1214 = vmatprep.mubr.bf16.mxu0 0
          %1215 = vmatmul.mubr.bf16.gmra.mrb[0].mxu0 %v1124
          %v1216 = vpop.f32.mrb[0].mxu0
          %v1217 = vadd.f32 %v1069, %v1216
          %v1218 = vpop.f32.mrb[0].mxu0
          %v1219 = vpop.f32.mrb[0].mxu0
          %v1220 = vadd.f32 %v1074, %v1219
          %v1221 = vpop.f32.mrb[0].mxu0
          %1222 = vmatprep.mubr.bf16.mxu0 0
          %1223 = vmatmul.mubr.bf16.gmra.mrb[0].mxu0 %v1125
          %v1224 = vpop.f32.mrb[0].mxu0
          %v1225 = vadd.f32 %v1079, %v1224
          %v1226 = vpop.f32.mrb[0].mxu0
          %v1227 = vpop.f32.mrb[0].mxu0
          %v1228 = vadd.f32 %v1084, %v1227
          %v1229 = vpop.f32.mrb[0].mxu0
          %1230 = vdwg.mxu0
          %vm1231 = vcmp.gt.f32.partialorder %v1169, 0.0
          %vm1232 = vcmp.gt.f32.partialorder %v1172, 0.0
          %vm1233 = vcmp.gt.f32.partialorder %v1177, 0.0
          %vm1234 = vcmp.gt.f32.partialorder %v1180, 0.0
          %vm1235 = vcmp.gt.f32.partialorder %v1185, 0.0
          %vm1236 = vcmp.gt.f32.partialorder %v1188, 0.0
          %vm1237 = vcmp.gt.f32.partialorder %v1193, 0.0
          %vm1238 = vcmp.gt.f32.partialorder %v1196, 0.0
          %vm1239 = vcmp.gt.f32.partialorder %v1201, 0.0
          %vm1240 = vcmp.gt.f32.partialorder %v1204, 0.0
          %vm1241 = vcmp.gt.f32.partialorder %v1209, 0.0
          %vm1242 = vcmp.gt.f32.partialorder %v1212, 0.0
          %vm1243 = vcmp.gt.f32.partialorder %v1217, 0.0
          %vm1244 = vcmp.gt.f32.partialorder %v1220, 0.0
          %vm1245 = vcmp.gt.f32.partialorder %v1225, 0.0
          %vm1246 = vcmp.gt.f32.partialorder %v1228, 0.0
          %v1247 = vmin.f32 %v1169, 0.0
          %v1248 = vmin.f32 %v1172, 0.0
          %v1249 = vmin.f32 %v1177, 0.0
          %v1250 = vmin.f32 %v1180, 0.0
          %v1251 = vmin.f32 %v1185, 0.0
          %v1252 = vmin.f32 %v1188, 0.0
          %v1253 = vmin.f32 %v1193, 0.0
          %v1254 = vmin.f32 %v1196, 0.0
          %v1255 = vmin.f32 %v1201, 0.0
          %v1256 = vmin.f32 %v1204, 0.0
          %v1257 = vmin.f32 %v1209, 0.0
          %v1258 = vmin.f32 %v1212, 0.0
          %v1259 = vmin.f32 %v1217, 0.0
          %v1260 = vmin.f32 %v1220, 0.0
          %v1261 = vmin.f32 %v1225, 0.0
          %v1262 = vmin.f32 %v1228, 0.0
          %v1263 = vmul.f32 %v1247, 1.442695
          %v1264 = vpow.pop %v1263
          %v1265 = vmul.f32 %v1248, 1.442695
          %v1266 = vpow.pop %v1265
          %v1267 = vmul.f32 %v1249, 1.442695
          %v1268 = vpow.pop %v1267
          %v1269 = vmul.f32 %v1250, 1.442695
          %v1270 = vpow.pop %v1269
          %v1271 = vmul.f32 %v1251, 1.442695
          %v1272 = vpow.pop %v1271
          %v1273 = vmul.f32 %v1252, 1.442695
          %v1274 = vpow.pop %v1273
          %v1275 = vmul.f32 %v1253, 1.442695
          %v1276 = vpow.pop %v1275
          %v1277 = vmul.f32 %v1254, 1.442695
          %v1278 = vpow.pop %v1277
          %v1279 = vmul.f32 %v1255, 1.442695
          %v1280 = vpow.pop %v1279
          %v1281 = vmul.f32 %v1256, 1.442695
          %v1282 = vpow.pop %v1281
          %v1283 = vmul.f32 %v1257, 1.442695
          %v1284 = vpow.pop %v1283
          %v1285 = vmul.f32 %v1258, 1.442695
          %v1286 = vpow.pop %v1285
          %v1287 = vmul.f32 %v1259, 1.442695
          %v1288 = vpow.pop %v1287
          %v1289 = vmul.f32 %v1260, 1.442695
          %v1290 = vpow.pop %v1289
          %v1291 = vmul.f32 %v1261, 1.442695
          %v1292 = vpow.pop %v1291
          %v1293 = vmul.f32 %v1262, 1.442695
          %v1294 = vpow.pop %v1293
          %v1295 = vsub.f32 %v1264, 1.0
          %v1296 = vsub.f32 %v1266, 1.0
          %v1297 = vsub.f32 %v1268, 1.0
          %v1298 = vsub.f32 %v1270, 1.0
          %v1299 = vsub.f32 %v1272, 1.0
          %v1300 = vsub.f32 %v1274, 1.0
          %v1301 = vsub.f32 %v1276, 1.0
          %v1302 = vsub.f32 %v1278, 1.0
          %v1303 = vsub.f32 %v1280, 1.0
          %v1304 = vsub.f32 %v1282, 1.0
          %v1305 = vsub.f32 %v1284, 1.0
          %v1306 = vsub.f32 %v1286, 1.0
          %v1307 = vsub.f32 %v1288, 1.0
          %v1308 = vsub.f32 %v1290, 1.0
          %v1309 = vsub.f32 %v1292, 1.0
          %v1310 = vsub.f32 %v1294, 1.0
          %v1311 = vsel %vm1231, %v1169, %v1295
          %v1312 = vsel %vm1232, %v1172, %v1296
          %v1313 = vsel %vm1233, %v1177, %v1297
          %v1314 = vsel %vm1234, %v1180, %v1298
          %v1315 = vsel %vm1235, %v1185, %v1299
          %v1316 = vsel %vm1236, %v1188, %v1300
          %v1317 = vsel %vm1237, %v1193, %v1301
          %v1318 = vsel %vm1238, %v1196, %v1302
          %v1319 = vsel %vm1239, %v1201, %v1303
          %v1320 = vsel %vm1240, %v1204, %v1304
          %v1321 = vsel %vm1241, %v1209, %v1305
          %v1322 = vsel %vm1242, %v1212, %v1306
          %v1323 = vsel %vm1243, %v1217, %v1307
          %v1324 = vsel %vm1244, %v1220, %v1308
          %v1325 = vsel %vm1245, %v1225, %v1309
          %v1326 = vsel %vm1246, %v1228, %v1310
          %v1327 = vld [vmem:[%s7] sm:$0xff]
          %v1328 = vld [vmem:[%s7 + $0x8] sm:$0xff]
          %v1329 = vld [vmem:[%s7 + $0x10] sm:$0xff]
          %v1330 = vld [vmem:[%s7 + $0x18] sm:$0xff]
          %v1331 = vld [vmem:[%s7 + $0x20] sm:$0xff]
          %v1332 = vld [vmem:[%s7 + $0x28] sm:$0xff]
          %v1333 = vld [vmem:[%s7 + $0x30] sm:$0xff]
          %v1334 = vld [vmem:[%s7 + $0x38] sm:$0xff]
          %v1335 = vld [vmem:[%s7 + $0x40] sm:$0xff]
          %v1336 = vld [vmem:[%s7 + $0x48] sm:$0xff]
          %v1337 = vld [vmem:[%s7 + $0x50] sm:$0xff]
          %v1338 = vld [vmem:[%s7 + $0x58] sm:$0xff]
          %v1339 = vld [vmem:[%s7 + $0x60] sm:$0xff]
          %v1340 = vld [vmem:[%s7 + $0x68] sm:$0xff]
          %v1341 = vld [vmem:[%s7 + $0x70] sm:$0xff]
          %v1342 = vld [vmem:[%s7 + $0x78] sm:$0xff]
          %1344 = vset.pattern.permute.xlu0 0
          %1345 = vperm.xlu0 %1344, %v1327
          %v1346 = vpop.permute.xlu0 %1345
          %1349 = vset.pattern.permute.xlu0 0
          %1350 = vperm.xlu0 %1349, %v1328
          %v1351 = vpop.permute.xlu0 %1350
          %1354 = vset.pattern.permute.xlu0 0
          %1355 = vperm.xlu0 %1354, %v1329
          %v1356 = vpop.permute.xlu0 %1355
          %1359 = vset.pattern.permute.xlu0 0
          %1360 = vperm.xlu0 %1359, %v1330
          %v1361 = vpop.permute.xlu0 %1360
          %1364 = vset.pattern.permute.xlu0 0
          %1365 = vperm.xlu0 %1364, %v1331
          %v1366 = vpop.permute.xlu0 %1365
          %1369 = vset.pattern.permute.xlu0 0
          %1370 = vperm.xlu0 %1369, %v1332
          %v1371 = vpop.permute.xlu0 %1370
          %1374 = vset.pattern.permute.xlu0 0
          %1375 = vperm.xlu0 %1374, %v1333
          %v1376 = vpop.permute.xlu0 %1375
          %1379 = vset.pattern.permute.xlu0 0
          %1380 = vperm.xlu0 %1379, %v1334
          %v1381 = vpop.permute.xlu0 %1380
          %1384 = vset.pattern.permute.xlu0 0
          %1385 = vperm.xlu0 %1384, %v1335
          %v1386 = vpop.permute.xlu0 %1385
          %1389 = vset.pattern.permute.xlu0 0
          %1390 = vperm.xlu0 %1389, %v1336
          %v1391 = vpop.permute.xlu0 %1390
          %1394 = vset.pattern.permute.xlu0 0
          %1395 = vperm.xlu0 %1394, %v1337
          %v1396 = vpop.permute.xlu0 %1395
          %1399 = vset.pattern.permute.xlu0 0
          %1400 = vperm.xlu0 %1399, %v1338
          %v1401 = vpop.permute.xlu0 %1400
          %1404 = vset.pattern.permute.xlu0 0
          %1405 = vperm.xlu0 %1404, %v1339
          %v1406 = vpop.permute.xlu0 %1405
          %1409 = vset.pattern.permute.xlu0 0
          %1410 = vperm.xlu0 %1409, %v1340
          %v1411 = vpop.permute.xlu0 %1410
          %1414 = vset.pattern.permute.xlu0 0
          %1415 = vperm.xlu0 %1414, %v1341
          %v1416 = vpop.permute.xlu0 %1415
          %1419 = vset.pattern.permute.xlu0 0
          %1420 = vperm.xlu0 %1419, %v1342
          %v1421 = vpop.permute.xlu0 %1420
          %v1423 = vmul.f32 %v1311, %v1346
          %v1424 = vmul.f32 %v1312, %v1351
          %v1425 = vmul.f32 %v1313, %v1356
          %v1426 = vmul.f32 %v1314, %v1361
          %v1427 = vmul.f32 %v1315, %v1366
          %v1428 = vmul.f32 %v1316, %v1371
          %v1429 = vmul.f32 %v1317, %v1376
          %v1430 = vmul.f32 %v1318, %v1381
          %v1431 = vmul.f32 %v1319, %v1386
          %v1432 = vmul.f32 %v1320, %v1391
          %v1433 = vmul.f32 %v1321, %v1396
          %v1434 = vmul.f32 %v1322, %v1401
          %v1435 = vmul.f32 %v1323, %v1406
          %v1436 = vmul.f32 %v1324, %v1411
          %v1437 = vmul.f32 %v1325, %v1416
          %v1438 = vmul.f32 %v1326, %v1421
          %v1439 = vadd.f32 %v1423, %v1424
          %v1440 = vadd.f32 %v1439, %v1425
          %v1441 = vadd.f32 %v1440, %v1426
          %v1442 = vadd.f32 %v1441, %v1427
          %v1443 = vadd.f32 %v1442, %v1428
          %v1444 = vadd.f32 %v1443, %v1429
          %v1445 = vadd.f32 %v1444, %v1430
          %v1446 = vadd.f32 %v1445, %v1431
          %v1447 = vadd.f32 %v1446, %v1432
          %v1448 = vadd.f32 %v1447, %v1433
          %v1449 = vadd.f32 %v1448, %v1434
          %v1450 = vadd.f32 %v1449, %v1435
          %v1451 = vadd.f32 %v1450, %v1436
          %v1452 = vadd.f32 %v1451, %v1437
          %v1453 = vadd.f32 %v1452, %v1438
          %v1454 = vrot.slane %v1453, 4
          %v1455 = vadd.f32 %v1453, %v1454
          %v1456 = vrot.slane %v1455, 2
          %v1457 = vadd.f32 %v1455, %v1456
          %v1458 = vrot.slane %v1457, 1
          %v1459 = vadd.f32 %v1457, %v1458
          %s1460 = sld [smem:[#allocation3]]
          %v1461 = vstv %s1460
          %v1462 = vadd.f32 %v1459, %v1461
          %s1463 = scalar_lea.vmem [#allocation2], %s576
          %1464 = vst [vmem:[%s1463] sm:$0x1] %v1462
        $region102: #{transdreamer_compute_target.1} parent=92 // loop_footer
          %s575 = sadd.s32 1, %s571
        $region103: #{transdreamer_compute_target.1} parent=92 // loop_footer_branch
          %570 = sbr.rel target = $region99
        $region104: #{transdreamer_compute_target.1} parent=92 // loop_exit
          _
        %s1465 = scalar_lea.vmem [#allocation2], 7
        %v1466 = vld [vmem:[%s1465] sm:$0x1]
        %v1467 = vld [vmem:[%s560 + $0x7] sm:$0x1]
        %v1468 = vld [vmem:[%s556 + $0x7] sm:$0x1]
        %v1469 = vmul.f32 %v1467, %v1466
        %v1470 = vmul.f32 %v1469, 0.05
        %v1471 = vadd.f32 %v1468, %v1470
        %v1472 = vmul.f32 %v1467, 0.95
        %v1473 = vmul.f32 %v1472, %v1466
        %v1474 = vadd.f32 %v1471, %v1473
        %1475 = vst [vmem:[%s564 + $0x6] sm:$0x1] %v1474
        %v1476 = vld [vmem:[%s560 + $0x6] sm:$0x1]
        %v1477 = vld [vmem:[%s556 + $0x6] sm:$0x1]
        %s1478 = scalar_lea.vmem [#allocation2], 6
        %v1479 = vld [vmem:[%s1478] sm:$0x1]
        %v1480 = vmul.f32 %v1476, %v1479
        %v1481 = vmul.f32 %v1480, 0.05
        %v1482 = vadd.f32 %v1477, %v1481
        %v1483 = vmul.f32 %v1476, 0.95
        %v1484 = vmul.f32 %v1483, %v1474
        %v1485 = vadd.f32 %v1482, %v1484
        %1486 = vst [vmem:[%s564 + $0x5] sm:$0x1] %v1485
        %v1487 = vld [vmem:[%s560 + $0x5] sm:$0x1]
        %v1488 = vld [vmem:[%s556 + $0x5] sm:$0x1]
        %s1489 = scalar_lea.vmem [#allocation2], 5
        %v1490 = vld [vmem:[%s1489] sm:$0x1]
        %v1491 = vmul.f32 %v1487, %v1490
        %v1492 = vmul.f32 %v1491, 0.05
        %v1493 = vadd.f32 %v1488, %v1492
        %v1494 = vmul.f32 %v1487, 0.95
        %v1495 = vmul.f32 %v1494, %v1485
        %v1496 = vadd.f32 %v1493, %v1495
        %1497 = vst [vmem:[%s564 + $0x4] sm:$0x1] %v1496
        %v1498 = vld [vmem:[%s560 + $0x4] sm:$0x1]
        %v1499 = vld [vmem:[%s556 + $0x4] sm:$0x1]
        %s1500 = scalar_lea.vmem [#allocation2], 4
        %v1501 = vld [vmem:[%s1500] sm:$0x1]
        %v1502 = vmul.f32 %v1498, %v1501
        %v1503 = vmul.f32 %v1502, 0.05
        %v1504 = vadd.f32 %v1499, %v1503
        %v1505 = vmul.f32 %v1498, 0.95
        %v1506 = vmul.f32 %v1505, %v1496
        %v1507 = vadd.f32 %v1504, %v1506
        %1508 = vst [vmem:[%s564 + $0x3] sm:$0x1] %v1507
        %v1509 = vld [vmem:[%s560 + $0x3] sm:$0x1]
        %v1510 = vld [vmem:[%s556 + $0x3] sm:$0x1]
        %s1511 = scalar_lea.vmem [#allocation2], 3
        %v1512 = vld [vmem:[%s1511] sm:$0x1]
        %v1513 = vmul.f32 %v1509, %v1512
        %v1514 = vmul.f32 %v1513, 0.05
        %v1515 = vadd.f32 %v1510, %v1514
        %v1516 = vmul.f32 %v1509, 0.95
        %v1517 = vmul.f32 %v1516, %v1507
        %v1518 = vadd.f32 %v1515, %v1517
        %1519 = vst [vmem:[%s564 + $0x2] sm:$0x1] %v1518
        %v1520 = vld [vmem:[%s560 + $0x2] sm:$0x1]
        %v1521 = vld [vmem:[%s556 + $0x2] sm:$0x1]
        %s1522 = scalar_lea.vmem [#allocation2], 2
        %v1523 = vld [vmem:[%s1522] sm:$0x1]
        %v1524 = vmul.f32 %v1520, %v1523
        %v1525 = vmul.f32 %v1524, 0.05
        %v1526 = vadd.f32 %v1521, %v1525
        %v1527 = vmul.f32 %v1520, 0.95
        %v1528 = vmul.f32 %v1527, %v1518
        %v1529 = vadd.f32 %v1526, %v1528
        %1530 = vst [vmem:[%s564 + $0x1] sm:$0x1] %v1529
        %v1531 = vld [vmem:[%s560 + $0x1] sm:$0x1]
        %v1532 = vld [vmem:[%s556 + $0x1] sm:$0x1]
        %s1533 = scalar_lea.vmem [#allocation2], 1
        %v1534 = vld [vmem:[%s1533] sm:$0x1]
        %v1535 = vmul.f32 %v1531, %v1534
        %v1536 = vmul.f32 %v1535, 0.05
        %v1537 = vadd.f32 %v1532, %v1536
        %v1538 = vmul.f32 %v1531, 0.95
        %v1539 = vmul.f32 %v1538, %v1529
        %v1540 = vadd.f32 %v1537, %v1539
        %1541 = vst [vmem:[%s564] sm:$0x1] %v1540
        %1542 = vst [vmem:[%s568] sm:$0x1] 1.0
        %v1543 = vld [vmem:[%s560] sm:$0x1]
        %1544 = vst [vmem:[%s568 + $0x1] sm:$0x1] %v1543
        %v1545 = vld [vmem:[%s560 + $0x1] sm:$0x1]
        %v1546 = vmul.f32 %v1543, %v1545
        %1547 = vst [vmem:[%s568 + $0x2] sm:$0x1] %v1546
        %v1548 = vld [vmem:[%s560 + $0x2] sm:$0x1]
        %v1549 = vmul.f32 %v1546, %v1548
        %1550 = vst [vmem:[%s568 + $0x3] sm:$0x1] %v1549
        %v1551 = vld [vmem:[%s560 + $0x3] sm:$0x1]
        %v1552 = vmul.f32 %v1549, %v1551
        %1553 = vst [vmem:[%s568 + $0x4] sm:$0x1] %v1552
        %v1554 = vld [vmem:[%s560 + $0x4] sm:$0x1]
        %v1555 = vmul.f32 %v1552, %v1554
        %1556 = vst [vmem:[%s568 + $0x5] sm:$0x1] %v1555
        %v1557 = vld [vmem:[%s560 + $0x5] sm:$0x1]
        %v1558 = vmul.f32 %v1555, %v1557
        %1559 = vst [vmem:[%s568 + $0x6] sm:$0x1] %v1558
        %v1560 = vld [vmem:[%s560 + $0x6] sm:$0x1]
        %v1561 = vmul.f32 %v1558, %v1560
        %1562 = vst [vmem:[%s568 + $0x7] sm:$0x1] %v1561
        %p1563 = scmp.lt.s32.totalorder %s23, 1
        %s1564 = scalar_select %p1563, %s23, 1
        %s1565 = smul.addr %s1564, 8
        %s1566 = scalar_lea.vmem %s9, %s1565
        %p1567 = scmp.lt.s32.totalorder %s23, 1
        %s1568 = scalar_select %p1567, %s23, 1
        %s1569 = smul.addr %s1568, 8
        %s1570 = scalar_lea.vmem %s10, %s1569
        // Predicated region
        $region105: #{transdreamer_compute_target.1} parent=92 // pred_check
          %p1571 = pneg %p245
        $region106: #{transdreamer_compute_target.1} parent=92 // pred_check_branch
          %1573 = sbr.rel (%p1571) target = $region108
        $region107: #{transdreamer_compute_target.1} parent=92 // pred_region
          _
        $region108: #{transdreamer_compute_target.1} parent=92 // pred_fallthru
          _
        // Predicated region
        $region109: #{transdreamer_compute_target.1} parent=92 // pred_check
          %p1574 = pneg %p271
        $region110: #{transdreamer_compute_target.1} parent=92 // pred_check_branch
          %1576 = sbr.rel (%p1574) target = $region112
        $region111: #{transdreamer_compute_target.1} parent=92 // pred_region
          _
        $region112: #{transdreamer_compute_target.1} parent=92 // pred_fallthru
          _
      $region93: #{transdreamer_compute_target.1} parent=5 // pred_fallthru
        _
      %p1577 = scmp.le.s32.totalorder 2, %s18
      // Predicated region
      $region113: #{transdreamer_compute_target.1} parent=5 // pred_check
        %p1578 = pneg %p1577
      $region114: #{transdreamer_compute_target.1} parent=5 // pred_check_branch
        %1580 = sbr.rel (%p1578) target = $region116
      $region115: #{transdreamer_compute_target.1} parent=5 // pred_region
        %s1581 = ssub.s32 %s18, 2
        // Predicated region
        $region117: #{transdreamer_compute_target.1} parent=115 // pred_check
          %p1582 = pneg %p251
        $region118: #{transdreamer_compute_target.1} parent=115 // pred_check_branch
          %1584 = sbr.rel (%p1582) target = $region120
        $region119: #{transdreamer_compute_target.1} parent=115 // pred_region
          %p1585 = scmp.lt.s32.totalorder %s24, 1
          %s1586 = scalar_select %p1585, %s24, 1
          %s1587 = smul.addr %s1586, 8
          %s1588 = scalar_lea.vmem %s9, %s1587
        $region120: #{transdreamer_compute_target.1} parent=115 // pred_fallthru
          _
        // Predicated region
        $region121: #{transdreamer_compute_target.1} parent=115 // pred_check
          %p1589 = pneg %p277
        $region122: #{transdreamer_compute_target.1} parent=115 // pred_check_branch
          %1591 = sbr.rel (%p1589) target = $region124
        $region123: #{transdreamer_compute_target.1} parent=115 // pred_region
          %p1592 = scmp.lt.s32.totalorder %s24, 1
          %s1593 = scalar_select %p1592, %s24, 1
          %s1594 = smul.addr %s1593, 8
          %s1595 = scalar_lea.vmem %s10, %s1594
        $region124: #{transdreamer_compute_target.1} parent=115 // pred_fallthru
          _
      $region116: #{transdreamer_compute_target.1} parent=5 // pred_fallthru
        _
    $region6: #{transdreamer_compute_target.1} parent=1 // loop_footer
      %s22 = sadd.s32 1, %s18
    $region7: #{transdreamer_compute_target.1} parent=1 // loop_footer_branch
      %17 = sbr.rel target = $region3
    $region8: #{transdreamer_compute_target.1} parent=1 // loop_exit
      _

</llo_original>
